<compile_context>
chip_gen: v6e
topology: v6e:2x2x1
jax: 0.10.0
libtpu: 0.0.40
codegen_flags: <defaults>
</compile_context>

<pallas_src>
import math

import jax
import jax.numpy as jnp
from jax.experimental import pallas as pl
from jax.experimental.pallas import tpu as pltpu


def _pick_block_batch(batch, feat, target_lanes=128, max_lanes=512):
    """Largest useful divisor TB of `batch` so that TB*feat targets >=128 lanes."""
    best = 1
    for d in range(1, batch + 1):
        if batch % d != 0:
            continue
        if d * feat <= max_lanes:
            best = d
            if d * feat >= target_lanes:
                break
    return best


def _make_dgcn_kernel(num_supports, orders, compute_dtype):
    """Kernel closure for fixed (static) sizes / dtypes."""

    def kernel(x_ref, *refs):
        a_refs = refs[:num_supports]
        theta_ref = refs[num_supports]        # (M, TB*F, TB*O) block-diag Theta
        bias_ref = refs[num_supports + 1]     # (1, TB*O) f32
        o_ref = refs[num_supports + 2]        # (N, TB*O)

        def prop(a, v_f32):
            # out[w, c] = sum_n a[n, w] * v[n, c]  == A^T @ v  (node contraction).
            # bf16 operands -> MXU, f32 accumulate.
            return jax.lax.dot_general(
                a, v_f32.astype(compute_dtype),
                (((0,), (0,)), ((), ())),
                preferred_element_type=jnp.float32)

        def theta_term(m, t_f32):
            # (N, TB*F) @ (TB*F, TB*O): block-diagonal Theta keeps batches separate,
            # so this is exactly   per-batch  term[:, bF:(b+1)F] @ Theta_m.
            return jnp.dot(t_f32.astype(compute_dtype), theta_ref[m],
                           preferred_element_type=jnp.float32)

        # Diffusion recurrence carried in f32; fused with the Theta contraction.
        x0 = x_ref[...].astype(jnp.float32)           # (N, TB*F)
        acc = theta_term(0, x0)                       # (N, TB*O) f32
        m = 1
        for a_ref in a_refs:
            a = a_ref[...]                            # (N, N) bf16
            x1 = prop(a, x0)
            acc = acc + theta_term(m, x1)
            m += 1
            for _ in range(2, orders + 1):
                x2 = 2.0 * prop(a, x1) - x0
                acc = acc + theta_term(m, x2)
                m += 1
                x1, x0 = x2, x1
            # NOTE: x0/x1 intentionally carry over into the next support,
            # exactly like the PyTorch loop.

        out = jnp.maximum(acc + bias_ref[...], 0.0)   # bias + ReLU in f32
        o_ref[...] = out.astype(o_ref.dtype)          # lane-dense (N, TB*O) store

    return kernel


def d_gcn_forward(X, supports, theta, bias, *, orders=2,
                  compute_dtype=jnp.bfloat16, block_batch=None):
    """X: (B, N, F); supports: list of (N, N); theta: (M*F, O); bias: (O,)."""
    B, N, F = X.shape
    O = theta.shape[1]
    S = len(supports)
    M = 1 + S * orders
    assert theta.shape[0] == M * F

    TB = _pick_block_batch(B, F) if block_batch is None else block_batch
    assert B % TB == 0, "batch must be divisible by the batch block"
    G = B // TB

    # ---------------- wrapper-side layout plumbing (plain XLA) ----------------
    # X: (B, N, F) -> (N, B*F): batch folded into the lane axis, bf16 for the MXU.
    x_fold = jnp.transpose(X, (1, 0, 2)).reshape(N, B * F).astype(compute_dtype)
    supports_c = [a.astype(compute_dtype) for a in supports]

    # Per-term block-diagonal Theta over a batch chunk:
    #   theta_bd[m, b*F + f, b*O + o] = Theta[m*F + f, o]
    theta_m = theta.reshape(M, F, O)
    eye = jnp.eye(TB, dtype=theta.dtype)
    theta_bd = jnp.einsum('bc,mfo->mbfco', eye, theta_m)
    theta_bd = theta_bd.reshape(M, TB * F, TB * O).astype(compute_dtype)

    # Bias tiled to the (b, o) lane layout of the output slab; kept in f32.
    bias_t = jnp.tile(bias.astype(jnp.float32), (TB,)).reshape(1, TB * O)

    kernel = _make_dgcn_kernel(S, orders, compute_dtype)

    in_specs = [pl.BlockSpec((N, TB * F), lambda g: (0, g))]
    in_specs += [pl.BlockSpec((N, N), lambda g: (0, 0)) for _ in range(S)]
    in_specs += [pl.BlockSpec((M, TB * F, TB * O), lambda g: (0, 0, 0)),
                 pl.BlockSpec((1, TB * O), lambda g: (0, 0))]

    out_slab = pl.pallas_call(
        kernel,
        out_shape=jax.ShapeDtypeStruct((N, B * O), X.dtype),
        grid=(G,),
        in_specs=in_specs,
        out_specs=pl.BlockSpec((N, TB * O), lambda g: (0, g)),
        compiler_params=pltpu.CompilerParams(
            dimension_semantics=("parallel",),
            vmem_limit_bytes=32 * 1024 * 1024),
    )(x_fold, *supports_c, theta_bd, bias_t)

    # Lane-dense (N, B*O) slab -> (B, N, O)
    return jnp.transpose(out_slab.reshape(N, B, O), (1, 0, 2))


def d_gcn_reference(X, supports, theta, bias, *, orders=2):
    """Pure-JAX f32 replica of the PyTorch forward (for validation)."""
    B, N, F = X.shape
    x0 = X
    xs = [x0]
    for A in supports:
        x1 = jnp.einsum('bnf,nw->bwf', x0, A)
        xs.append(x1)
        for _k in range(2, orders + 1):
            x2 = 2.0 * jnp.einsum('bnf,nw->bwf', x1, A) - x0
            xs.append(x2)
            x1, x0 = x2, x1
    x = jnp.stack(xs, axis=0)                 # (M, B, N, F)
    x = jnp.transpose(x, (1, 2, 0, 3))        # (B, N, M, F)
    x = x.reshape(B, N, -1)                   # (B, N, M*F)
    out = x @ theta + bias
    return jnp.maximum(out, 0.0)


if __name__ == "__main__":
    # Small deterministic problem: B=16 so that the lane-folded width B*F hits
    # 128 lanes; N=16 nodes, in_channels=8, out=32, orders=2, two supports
    # (A_q, A_h) -> num_matrices = 5.
    B, N, F_in, O = 16, 16, 8, 32
    orders = 2
    num_mat = 2 * orders + 1

    key = jax.random.PRNGKey(0)
    kx, ka0, ka1, kth, kb = jax.random.split(key, 5)

    X = jax.random.normal(kx, (B, N, F_in), dtype=jnp.float32)

    # Random row-normalized "diffusion" supports (deterministic).
    A_q = jax.random.uniform(ka0, (N, N), dtype=jnp.float32)
    A_q = A_q / jnp.sum(A_q, axis=1, keepdims=True)
    A_h = jax.random.uniform(ka1, (N, N), dtype=jnp.float32)
    A_h = A_h / jnp.sum(A_h, axis=1, keepdims=True)
    supports = [A_q, A_h]

    # Parameter init mirroring reset_parameters(): uniform(-stdv, stdv).
    stdv = 1.0 / math.sqrt(O)
    Theta1 = jax.random.uniform(kth, (F_in * num_mat, O),
                                minval=-stdv, maxval=stdv, dtype=jnp.float32)
    stdv1 = 1.0 / math.sqrt(O)
    bias = jax.random.uniform(kb, (O,), minval=-stdv1, maxval=stdv1,
                              dtype=jnp.float32)

    out = d_gcn_forward(X, supports, Theta1, bias, orders=orders)
    out = jax.block_until_ready(out)

    ref = d_gcn_reference(X, supports, Theta1, bias, orders=orders)
    assert out.shape == (B, N, O)
    # bf16 MXU operands vs the f32 reference: allow small drift.
    assert jnp.allclose(out, ref, atol=3e-2, rtol=3e-2), "mismatch vs reference"

    print("KERNEL_OK")
</pallas_src>

<mosaic_0001>
module attributes {stable_mosaic.version = 11 : i64} {
  func.func @kernel(%arg0: i32, %arg1: memref<16x128xbf16, #tpu.memory_space<vmem>>, %arg2: memref<16x16xbf16, #tpu.memory_space<vmem>>, %arg3: memref<16x16xbf16, #tpu.memory_space<vmem>>, %arg4: memref<5x128x512xbf16, #tpu.memory_space<vmem>>, %arg5: memref<1x512xf32, #tpu.memory_space<vmem>>, %arg6: memref<16x512xf32, #tpu.memory_space<vmem>>) attributes {dimension_semantics = [#tpu.dimension_semantics<parallel>], iteration_bounds = array<i64: 1>, scalar_prefetch = 0 : i64, scratch_operands = 0 : i64, tpu.core_type = #tpu.core_type<tc>, window_params = [{transform_indices = @transform_0, window_bounds = array<i64: 16, 128>}, {pipeline_mode = #tpu.pipeline_mode<synchronous>, transform_indices = @transform_1, window_bounds = array<i64: 16, 16>}, {pipeline_mode = #tpu.pipeline_mode<synchronous>, transform_indices = @transform_2, window_bounds = array<i64: 16, 16>}, {pipeline_mode = #tpu.pipeline_mode<synchronous>, transform_indices = @transform_3, window_bounds = array<i64: 5, 128, 512>}, {pipeline_mode = #tpu.pipeline_mode<synchronous>, transform_indices = @transform_4, window_bounds = array<i64: 1, 512>}, {transform_indices = @transform_5, window_bounds = array<i64: 16, 512>}]} {
    %c0 = arith.constant 0 : index
    %c0_0 = arith.constant 0 : index
    %0 = vector.load %arg1[%c0, %c0_0] : memref<16x128xbf16, #tpu.memory_space<vmem>>, vector<16x128xbf16>
    %1 = arith.extf %0 : vector<16x128xbf16> to vector<16x128xf32>
    %2 = arith.truncf %1 : vector<16x128xf32> to vector<16x128xbf16>
    %c0_1 = arith.constant 0 : index
    %c0_2 = arith.constant 0 : index
    %c0_3 = arith.constant 0 : index
    %3 = vector.load %arg4[%c0_1, %c0_2, %c0_3] : memref<5x128x512xbf16, #tpu.memory_space<vmem>>, vector<1x128x512xbf16>
    %4 = vector.shape_cast %3 : vector<1x128x512xbf16> to vector<128x512xbf16>
    %cst = arith.constant dense<0.000000e+00> : vector<16x512xf32>
    %5 = tpu.matmul %2, %4, %cst {dimension_numbers = #tpu.dot_dimension_numbers<[1], [0], [0], [1], [0, 0, 1, 1], [], []>} : vector<16x128xbf16>, vector<128x512xbf16>, vector<16x512xf32> -> vector<16x512xf32>
    %c0_4 = arith.constant 0 : index
    %c0_5 = arith.constant 0 : index
    %6 = vector.load %arg2[%c0_4, %c0_5] : memref<16x16xbf16, #tpu.memory_space<vmem>>, vector<16x16xbf16>
    %7 = arith.truncf %1 : vector<16x128xf32> to vector<16x128xbf16>
    %cst_6 = arith.constant dense<0.000000e+00> : vector<16x128xf32>
    %8 = tpu.matmul %6, %7, %cst_6 {dimension_numbers = #tpu.dot_dimension_numbers<[0], [0], [1], [1], [0, 1, 1, 1], [], []>} : vector<16x16xbf16>, vector<16x128xbf16>, vector<16x128xf32> -> vector<16x128xf32>
    %9 = arith.truncf %8 : vector<16x128xf32> to vector<16x128xbf16>
    %c1 = arith.constant 1 : index
    %c0_7 = arith.constant 0 : index
    %c0_8 = arith.constant 0 : index
    %10 = vector.load %arg4[%c1, %c0_7, %c0_8] : memref<5x128x512xbf16, #tpu.memory_space<vmem>>, vector<1x128x512xbf16>
    %11 = vector.shape_cast %10 : vector<1x128x512xbf16> to vector<128x512xbf16>
    %cst_9 = arith.constant dense<0.000000e+00> : vector<16x512xf32>
    %12 = tpu.matmul %9, %11, %cst_9 {dimension_numbers = #tpu.dot_dimension_numbers<[1], [0], [0], [1], [0, 0, 1, 1], [], []>} : vector<16x128xbf16>, vector<128x512xbf16>, vector<16x512xf32> -> vector<16x512xf32>
    %13 = arith.addf %5, %12 : vector<16x512xf32>
    %14 = arith.truncf %8 : vector<16x128xf32> to vector<16x128xbf16>
    %cst_10 = arith.constant dense<0.000000e+00> : vector<16x128xf32>
    %15 = tpu.matmul %6, %14, %cst_10 {dimension_numbers = #tpu.dot_dimension_numbers<[0], [0], [1], [1], [0, 1, 1, 1], [], []>} : vector<16x16xbf16>, vector<16x128xbf16>, vector<16x128xf32> -> vector<16x128xf32>
    %cst_11 = arith.constant 2.000000e+00 : f32
    %16 = vector.broadcast %cst_11 : f32 to vector<16x128xf32>
    %17 = arith.mulf %16, %15 : vector<16x128xf32>
    %18 = arith.subf %17, %1 : vector<16x128xf32>
    %19 = arith.truncf %18 : vector<16x128xf32> to vector<16x128xbf16>
    %c2 = arith.constant 2 : index
    %c0_12 = arith.constant 0 : index
    %c0_13 = arith.constant 0 : index
    %20 = vector.load %arg4[%c2, %c0_12, %c0_13] : memref<5x128x512xbf16, #tpu.memory_space<vmem>>, vector<1x128x512xbf16>
    %21 = vector.shape_cast %20 : vector<1x128x512xbf16> to vector<128x512xbf16>
    %cst_14 = arith.constant dense<0.000000e+00> : vector<16x512xf32>
    %22 = tpu.matmul %19, %21, %cst_14 {dimension_numbers = #tpu.dot_dimension_numbers<[1], [0], [0], [1], [0, 0, 1, 1], [], []>} : vector<16x128xbf16>, vector<128x512xbf16>, vector<16x512xf32> -> vector<16x512xf32>
    %23 = arith.addf %13, %22 : vector<16x512xf32>
    %c0_15 = arith.constant 0 : index
    %c0_16 = arith.constant 0 : index
    %24 = vector.load %arg3[%c0_15, %c0_16] : memref<16x16xbf16, #tpu.memory_space<vmem>>, vector<16x16xbf16>
    %25 = arith.truncf %8 : vector<16x128xf32> to vector<16x128xbf16>
    %cst_17 = arith.constant dense<0.000000e+00> : vector<16x128xf32>
    %26 = tpu.matmul %24, %25, %cst_17 {dimension_numbers = #tpu.dot_dimension_numbers<[0], [0], [1], [1], [0, 1, 1, 1], [], []>} : vector<16x16xbf16>, vector<16x128xbf16>, vector<16x128xf32> -> vector<16x128xf32>
    %27 = arith.truncf %26 : vector<16x128xf32> to vector<16x128xbf16>
    %c3 = arith.constant 3 : index
    %c0_18 = arith.constant 0 : index
    %c0_19 = arith.constant 0 : index
    %28 = vector.load %arg4[%c3, %c0_18, %c0_19] : memref<5x128x512xbf16, #tpu.memory_space<vmem>>, vector<1x128x512xbf16>
    %29 = vector.shape_cast %28 : vector<1x128x512xbf16> to vector<128x512xbf16>
    %cst_20 = arith.constant dense<0.000000e+00> : vector<16x512xf32>
    %30 = tpu.matmul %27, %29, %cst_20 {dimension_numbers = #tpu.dot_dimension_numbers<[1], [0], [0], [1], [0, 0, 1, 1], [], []>} : vector<16x128xbf16>, vector<128x512xbf16>, vector<16x512xf32> -> vector<16x512xf32>
    %31 = arith.addf %23, %30 : vector<16x512xf32>
    %32 = arith.truncf %26 : vector<16x128xf32> to vector<16x128xbf16>
    %cst_21 = arith.constant dense<0.000000e+00> : vector<16x128xf32>
    %33 = tpu.matmul %24, %32, %cst_21 {dimension_numbers = #tpu.dot_dimension_numbers<[0], [0], [1], [1], [0, 1, 1, 1], [], []>} : vector<16x16xbf16>, vector<16x128xbf16>, vector<16x128xf32> -> vector<16x128xf32>
    %cst_22 = arith.constant 2.000000e+00 : f32
    %34 = vector.broadcast %cst_22 : f32 to vector<16x128xf32>
    %35 = arith.mulf %34, %33 : vector<16x128xf32>
    %36 = arith.subf %35, %8 : vector<16x128xf32>
    %37 = arith.truncf %36 : vector<16x128xf32> to vector<16x128xbf16>
    %c4 = arith.constant 4 : index
    %c0_23 = arith.constant 0 : index
    %c0_24 = arith.constant 0 : index
    %38 = vector.load %arg4[%c4, %c0_23, %c0_24] : memref<5x128x512xbf16, #tpu.memory_space<vmem>>, vector<1x128x512xbf16>
    %39 = vector.shape_cast %38 : vector<1x128x512xbf16> to vector<128x512xbf16>
    %cst_25 = arith.constant dense<0.000000e+00> : vector<16x512xf32>
    %40 = tpu.matmul %37, %39, %cst_25 {dimension_numbers = #tpu.dot_dimension_numbers<[1], [0], [0], [1], [0, 0, 1, 1], [], []>} : vector<16x128xbf16>, vector<128x512xbf16>, vector<16x512xf32> -> vector<16x512xf32>
    %41 = arith.addf %31, %40 : vector<16x512xf32>
    %c0_26 = arith.constant 0 : index
    %c0_27 = arith.constant 0 : index
    %42 = vector.load %arg5[%c0_26, %c0_27] : memref<1x512xf32, #tpu.memory_space<vmem>>, vector<1x512xf32>
    %43 = vector.broadcast %42 : vector<1x512xf32> to vector<16x512xf32>
    %44 = arith.addf %41, %43 : vector<16x512xf32>
    %cst_28 = arith.constant 0.000000e+00 : f32
    %45 = vector.broadcast %cst_28 : f32 to vector<16x512xf32>
    %46 = arith.maximumf %44, %45 : vector<16x512xf32>
    %c0_29 = arith.constant 0 : index
    %c0_30 = arith.constant 0 : index
    %47 = vector.load %arg6[%c0_29, %c0_30] : memref<16x512xf32, #tpu.memory_space<vmem>>, vector<16x512xf32>
    tpu.vector_store %arg6[%c0_29, %c0_30], %46 {strides = array<i32>} : memref<16x512xf32, #tpu.memory_space<vmem>>, vector<16x512xf32>,
    return
  }
  func.func @transform_0(%arg0: i32) -> (i32, i32) {
    %c0_i32 = arith.constant 0 : i32
    %c0_i32_0 = arith.constant 0 : i32
    return %c0_i32, %arg0 : i32, i32
  }
  func.func @transform_1(%arg0: i32) -> (i32, i32) {
    %c0_i32 = arith.constant 0 : i32
    %c0_i32_0 = arith.constant 0 : i32
    %c0_i32_1 = arith.constant 0 : i32
    return %c0_i32, %c0_i32_0 : i32, i32
  }
  func.func @transform_2(%arg0: i32) -> (i32, i32) {
    %c0_i32 = arith.constant 0 : i32
    %c0_i32_0 = arith.constant 0 : i32
    %c0_i32_1 = arith.constant 0 : i32
    return %c0_i32, %c0_i32_0 : i32, i32
  }
  func.func @transform_3(%arg0: i32) -> (i32, i32, i32) {
    %c0_i32 = arith.constant 0 : i32
    %c0_i32_0 = arith.constant 0 : i32
    %c0_i32_1 = arith.constant 0 : i32
    %c0_i32_2 = arith.constant 0 : i32
    return %c0_i32, %c0_i32_0, %c0_i32_1 : i32, i32, i32
  }
  func.func @transform_4(%arg0: i32) -> (i32, i32) {
    %c0_i32 = arith.constant 0 : i32
    %c0_i32_0 = arith.constant 0 : i32
    %c0_i32_1 = arith.constant 0 : i32
    return %c0_i32, %c0_i32_0 : i32, i32
  }
  func.func @transform_5(%arg0: i32) -> (i32, i32) {
    %c0_i32 = arith.constant 0 : i32
    %c0_i32_0 = arith.constant 0 : i32
    return %c0_i32, %arg0 : i32, i32
  }
}

</mosaic_0001>

<llo_original>
// kernel: tpu_custom_call.1
$region0: #{tpu_custom_call.1}
  #allocation0 [shape = 'u32[]', space=smem, size = 0x4, offset = 0x4, fixed_abs, tag = 'smem constant byte address 0x4 - core index']
  #allocation1 [shape = 'u32[144,128]{1,0:T(1,128)}', space=vmem, size = 0x12000, scoped, tag = 'internal scratch']
  %s0 = inlined_call_operand.hbm [shape: bf16[16,128], index: 0, kind: input, shape index: {}]
  %s1 = inlined_call_operand.hbm [shape: bf16[16,16], index: 1, kind: input, shape index: {}]
  %s2 = inlined_call_operand.hbm [shape: bf16[16,16], index: 2, kind: input, shape index: {}]
  %s3 = inlined_call_operand.hbm [shape: bf16[5,128,512], index: 3, kind: input, shape index: {}]
  %s4 = inlined_call_operand.vmem [shape: f32[1,512], index: 4, kind: input, shape index: {}]
  %s5 = inlined_call_operand.hbm [shape: f32[16,512], index: 5, kind: output, shape index: {}]
  %s6 = sld [smem:[#allocation0]]
  $region46: #{tpu_custom_call.1} parent=0
    _
  %s8 = ssub.s32 1, %s6
  %s9 = scalar_select 0, %s8, %s6
  $region1: #{tpu_custom_call.1} parent=0
    #allocation2 [shape = 'u8[4096]{0}', space=vmem, size = 0x1000, scoped, tag = 'input window, operand 0, single buffered']
    #allocation3 [shape = 's32[1]{0}', space=sflag, size = 0x4, scoped, tag = 'scoped memory for tpu_custom_call.1']
    #allocation4 [shape = 's32[1]{0}', space=sflag, size = 0x4, scoped, tag = 'scoped memory for tpu_custom_call.1']
    #allocation5 [shape = 'u8[4096]{0}', space=vmem, size = 0x1000, scoped, tag = 'input window, operand 1, single buffered']
    #allocation6 [shape = 's32[1]{0}', space=sflag, size = 0x4, scoped, tag = 'scoped memory for tpu_custom_call.1']
    #allocation7 [shape = 'u8[4096]{0}', space=vmem, size = 0x1000, scoped, tag = 'input window, operand 2, single buffered']
    #allocation8 [shape = 'u8[655360]{0}', space=vmem, size = 0xa0000, scoped, tag = 'input window, operand 3, single buffered']
    #allocation9 [shape = 's32[1]{0}', space=sflag, size = 0x4, scoped, tag = 'scoped memory for tpu_custom_call.1']
    #allocation10 [shape = 'u8[32768]{0}', space=vmem, size = 0x8000, scoped, tag = 'output window, operand 0, single buffered']
    %10 = vsyncpa [#allocation3], 0
    %11 = vsyncpa [#allocation6], 0
    %12 = vsyncpa [#allocation9], 0
    %13 = vsyncpa [#allocation4], 0
    // Predicated region
    $region2: #{tpu_custom_call.1} parent=1 // pred_check
      _
    $region3: #{tpu_custom_call.1} parent=1 // pred_check_branch
      %15 = sbr.rel (0) target = $region5
    $region4: #{tpu_custom_call.1} parent=1 // pred_region
      %s17 = ssub.s32 128, 128
      %18 = vsyncadd [#allocation3], %s17
      %s19 = sshll.u32 [#allocation2], 4
      %s20 = int_to_ptr.vmem [resolvable:$true] %s19
      %25 = dma.hbm_to_vmem [thread:$0]  %s0, 128, %s20, [#allocation3], 64, 64, 4
    $region5: #{tpu_custom_call.1} parent=1 // pred_fallthru
      _
    // Predicated region
    $region6: #{tpu_custom_call.1} parent=1 // pred_check
      _
    $region7: #{tpu_custom_call.1} parent=1 // pred_check_branch
      %27 = sbr.rel (0) target = $region9
    $region8: #{tpu_custom_call.1} parent=1 // pred_region
      %s29 = ssub.s32 128, 128
      %30 = vsyncadd [#allocation6], %s29
      %s31 = sshll.u32 [#allocation5], 4
      %s32 = int_to_ptr.vmem [resolvable:$true] %s31
      %37 = dma.hbm_to_vmem [thread:$0]  %s1, 128, %s32, [#allocation6], 64, 64, 4
    $region9: #{tpu_custom_call.1} parent=1 // pred_fallthru
      _
    // Predicated region
    $region10: #{tpu_custom_call.1} parent=1 // pred_check
      _
    $region11: #{tpu_custom_call.1} parent=1 // pred_check_branch
      %39 = sbr.rel (0) target = $region13
    $region12: #{tpu_custom_call.1} parent=1 // pred_region
      %s41 = ssub.s32 128, 128
      %42 = vsyncadd [#allocation6], %s41
      %s43 = sshll.u32 [#allocation7], 4
      %s44 = int_to_ptr.vmem [resolvable:$true] %s43
      %49 = dma.hbm_to_vmem [thread:$0]  %s2, 128, %s44, [#allocation6], 64, 64, 4
    $region13: #{tpu_custom_call.1} parent=1 // pred_fallthru
      _
    // Predicated region
    $region14: #{tpu_custom_call.1} parent=1 // pred_check
      _
    $region15: #{tpu_custom_call.1} parent=1 // pred_check_branch
      %51 = sbr.rel (0) target = $region17
    $region16: #{tpu_custom_call.1} parent=1 // pred_region
      %s53 = ssub.s32 20480, 20480
      %54 = vsyncadd [#allocation9], %s53
      %s55 = sshll.u32 [#allocation8], 4
      %s56 = int_to_ptr.vmem [resolvable:$true] %s55
      %61 = dma.hbm_to_vmem [thread:$0]  %s3, 20480, %s56, [#allocation9], 256, 256, 16
    $region17: #{tpu_custom_call.1} parent=1 // pred_fallthru
      _
    // Predicated region
    $region18: #{tpu_custom_call.1} parent=1 // pred_check
      _
    $region19: #{tpu_custom_call.1} parent=1 // pred_check_branch
      %63 = sbr.rel (0) target = $region21
    $region20: #{tpu_custom_call.1} parent=1 // pred_region
      _
    $region21: #{tpu_custom_call.1} parent=1 // pred_fallthru
      _
    // Predicated region
    $region22: #{tpu_custom_call.1} parent=1 // pred_check
      _
    $region23: #{tpu_custom_call.1} parent=1 // pred_check_branch
      %65 = sbr.rel (0) target = $region25
    $region24: #{tpu_custom_call.1} parent=1 // pred_region
      %66 = dma.done [#allocation3], 128
    $region25: #{tpu_custom_call.1} parent=1 // pred_fallthru
      _
    // Predicated region
    $region26: #{tpu_custom_call.1} parent=1 // pred_check
      _
    $region27: #{tpu_custom_call.1} parent=1 // pred_check_branch
      %68 = sbr.rel (0) target = $region29
    $region28: #{tpu_custom_call.1} parent=1 // pred_region
      %69 = dma.done [#allocation6], 128
    $region29: #{tpu_custom_call.1} parent=1 // pred_fallthru
      _
    // Predicated region
    $region30: #{tpu_custom_call.1} parent=1 // pred_check
      _
    $region31: #{tpu_custom_call.1} parent=1 // pred_check_branch
      %71 = sbr.rel (0) target = $region33
    $region32: #{tpu_custom_call.1} parent=1 // pred_region
      %72 = dma.done [#allocation6], 128
    $region33: #{tpu_custom_call.1} parent=1 // pred_fallthru
      _
    // Predicated region
    $region34: #{tpu_custom_call.1} parent=1 // pred_check
      _
    $region35: #{tpu_custom_call.1} parent=1 // pred_check_branch
      %74 = sbr.rel (0) target = $region37
    $region36: #{tpu_custom_call.1} parent=1 // pred_region
      %75 = dma.done [#allocation9], 20480
    $region37: #{tpu_custom_call.1} parent=1 // pred_fallthru
      _
    %v77 = vld [vmem:[#allocation2] sm:$0xf]
    %v78 = vld [vmem:[#allocation2 + $0x4] sm:$0xf]
    %v79 = vunpack.c.l.bf16 %v77
    %v80 = vunpack.c.l.bf16 %v78
    %v81 = vld [vmem:[#allocation8] sm:$0xff]
    %v82 = vld [vmem:[#allocation8 + $0x8] sm:$0xff]
    %v83 = vld [vmem:[#allocation8 + $0x10] sm:$0xff]
    %v84 = vld [vmem:[#allocation8 + $0x18] sm:$0xff]
    %v85 = vld [vmem:[#allocation8 + $0x20] sm:$0xff]
    %v86 = vld [vmem:[#allocation8 + $0x28] sm:$0xff]
    %v87 = vld [vmem:[#allocation8 + $0x30] sm:$0xff]
    %v88 = vld [vmem:[#allocation8 + $0x38] sm:$0xff]
    %v89 = vld [vmem:[#allocation8 + $0x40] sm:$0xff]
    %v90 = vld [vmem:[#allocation8 + $0x48] sm:$0xff]
    %v91 = vld [vmem:[#allocation8 + $0x50] sm:$0xff]
    %v92 = vld [vmem:[#allocation8 + $0x58] sm:$0xff]
    %v93 = vld [vmem:[#allocation8 + $0x60] sm:$0xff]
    %v94 = vld [vmem:[#allocation8 + $0x68] sm:$0xff]
    %v95 = vld [vmem:[#allocation8 + $0x70] sm:$0xff]
    %v96 = vld [vmem:[#allocation8 + $0x78] sm:$0xff]
    %v97 = vld [vmem:[#allocation8 + $0x80] sm:$0xff]
    %v98 = vld [vmem:[#allocation8 + $0x88] sm:$0xff]
    %v99 = vld [vmem:[#allocation8 + $0x90] sm:$0xff]
    %v100 = vld [vmem:[#allocation8 + $0x98] sm:$0xff]
    %v101 = vld [vmem:[#allocation8 + $0xa0] sm:$0xff]
    %v102 = vld [vmem:[#allocation8 + $0xa8] sm:$0xff]
    %v103 = vld [vmem:[#allocation8 + $0xb0] sm:$0xff]
    %v104 = vld [vmem:[#allocation8 + $0xb8] sm:$0xff]
    %v105 = vld [vmem:[#allocation8 + $0xc0] sm:$0xff]
    %v106 = vld [vmem:[#allocation8 + $0xc8] sm:$0xff]
    %v107 = vld [vmem:[#allocation8 + $0xd0] sm:$0xff]
    %v108 = vld [vmem:[#allocation8 + $0xd8] sm:$0xff]
    %v109 = vld [vmem:[#allocation8 + $0xe0] sm:$0xff]
    %v110 = vld [vmem:[#allocation8 + $0xe8] sm:$0xff]
    %v111 = vld [vmem:[#allocation8 + $0xf0] sm:$0xff]
    %v112 = vld [vmem:[#allocation8 + $0xf8] sm:$0xff]
    %v113 = vld [vmem:[#allocation5] sm:$0xf]
    %v114 = vld [vmem:[#allocation5 + $0x4] sm:$0xf]
    %v117 = vunpack.c.l.b16 %v113
    %v118 = vunpack.c.l.b16 %v114
    %v119 = vpack.c.b16 %v118, %v117
    %121 = vxpose.xlu0.c.b16.start [1/8] %v119, 128
    %122 = vxpose.xlu0.c.b16.cont [2/8] 0, 128
    %123 = vxpose.xlu0.c.b16.cont [3/8] 0, 128
    %124 = vxpose.xlu0.c.b16.cont [4/8] 0, 128
    %125 = vxpose.xlu0.c.b16.cont [5/8] 0, 128
    %126 = vxpose.xlu0.c.b16.cont [6/8] 0, 128
    %127 = vxpose.xlu0.c.b16.cont [7/8] 0, 128
    %128 = vxpose.xlu0.c.b16.end [8/8] 0, 128
    %v129 = vpop.trf.xlu0
    %v130 = vpop.trf.xlu0
    %v131 = vpop.trf.xlu0
    %v132 = vpop.trf.xlu0
    %v133 = vpop.trf.xlu0
    %v134 = vpop.trf.xlu0
    %v135 = vpop.trf.xlu0
    %v136 = vpop.trf.xlu0
    %v139 = vunpack.c.l.b16 %v77
    %v140 = vunpack.c.l.b16 %v78
    %v141 = vpack.c.b16 %v140, %v139
    %vm143 = vcmask 130048
    %v145 = vsel %vm143, %v129, 0
    %147 = vmatprep.subr.bf16.mxu0 0
    %148 = vmatpush1.bf16.msra.mxu0 0
    %149 = vmatprep.subr.bf16.mxu0 0
    %150 = vmatpush1.bf16.msra.mxu0 0
    %151 = vmatprep.subr.bf16.mxu0 0
    %152 = vmatpush1.bf16.msra.mxu0 0
    %153 = vmatprep.subr.bf16.mxu0 0
    %154 = vmatpush1.bf16.msra.mxu0 0
    %155 = vmatprep.subr.bf16.mxu0 0
    %156 = vmatpush1.bf16.msra.mxu0 0
    %157 = vmatprep.subr.bf16.mxu0 0
    %158 = vmatpush1.bf16.msra.mxu0 0
    %159 = vmatprep.subr.bf16.mxu0 0
    %160 = vmatpush1.bf16.msra.mxu0 0
    %161 = vmatprep.subr.bf16.mxu0 0
    %162 = vmatpush1.bf16.msra.mxu0 %v141
    %163 = vmatprep.subr.bf16.mxu0 0
    %164 = vmatpush2.bf16.msra.mxu0 0
    %165 = vmatprep.subr.bf16.mxu0 0
    %166 = vmatpush2.bf16.msra.mxu0 0
    %167 = vmatprep.subr.bf16.mxu0 0
    %168 = vmatpush2.bf16.msra.mxu0 0
    %169 = vmatprep.subr.bf16.mxu0 0
    %170 = vmatpush2.bf16.msra.mxu0 0
    %171 = vmatprep.subr.bf16.mxu0 0
    %172 = vmatpush2.bf16.msra.mxu0 0
    %173 = vmatprep.subr.bf16.mxu0 0
    %174 = vmatpush2.bf16.msra.mxu0 0
    %175 = vmatprep.subr.bf16.mxu0 0
    %176 = vmatpush2.bf16.msra.mxu0 0
    %177 = vmatprep.subr.bf16.mxu0 0
    %178 = vmatpush2.bf16.msra.mxu0 0
    %179 = vmatprep.mubr.bf16.mxu0 0
    %180 = vmatmul.mubr.bf16.gmra.mxu0 %v145
    %v181 = vpop.f32.mrf.mxu0
    %v182 = vadd.f32 0.0, %v181
    %v183 = vpop.f32.mrf.mxu0
    %v184 = vpop.f32.mrf.mxu0
    %v185 = vadd.f32 0.0, %v184
    %v186 = vpop.f32.mrf.mxu0
    %187 = vdwg.mxu0
    %v188 = vpack.c.bf16 %v185, %v182
    %s189 = scalar_lea.vmem [#allocation8], 256
    %v190 = vld [vmem:[%s189] sm:$0xff]
    %v191 = vld [vmem:[%s189 + $0x8] sm:$0xff]
    %v192 = vld [vmem:[%s189 + $0x10] sm:$0xff]
    %v193 = vld [vmem:[%s189 + $0x18] sm:$0xff]
    %v194 = vld [vmem:[%s189 + $0x20] sm:$0xff]
    %v195 = vld [vmem:[%s189 + $0x28] sm:$0xff]
    %v196 = vld [vmem:[%s189 + $0x30] sm:$0xff]
    %v197 = vld [vmem:[%s189 + $0x38] sm:$0xff]
    %v198 = vld [vmem:[%s189 + $0x40] sm:$0xff]
    %v199 = vld [vmem:[%s189 + $0x48] sm:$0xff]
    %v200 = vld [vmem:[%s189 + $0x50] sm:$0xff]
    %v201 = vld [vmem:[%s189 + $0x58] sm:$0xff]
    %v202 = vld [vmem:[%s189 + $0x60] sm:$0xff]
    %v203 = vld [vmem:[%s189 + $0x68] sm:$0xff]
    %v204 = vld [vmem:[%s189 + $0x70] sm:$0xff]
    %v205 = vld [vmem:[%s189 + $0x78] sm:$0xff]
    %v206 = vld [vmem:[%s189 + $0x80] sm:$0xff]
    %v207 = vld [vmem:[%s189 + $0x88] sm:$0xff]
    %v208 = vld [vmem:[%s189 + $0x90] sm:$0xff]
    %v209 = vld [vmem:[%s189 + $0x98] sm:$0xff]
    %v210 = vld [vmem:[%s189 + $0xa0] sm:$0xff]
    %v211 = vld [vmem:[%s189 + $0xa8] sm:$0xff]
    %v212 = vld [vmem:[%s189 + $0xb0] sm:$0xff]
    %v213 = vld [vmem:[%s189 + $0xb8] sm:$0xff]
    %v214 = vld [vmem:[%s189 + $0xc0] sm:$0xff]
    %v215 = vld [vmem:[%s189 + $0xc8] sm:$0xff]
    %v216 = vld [vmem:[%s189 + $0xd0] sm:$0xff]
    %v217 = vld [vmem:[%s189 + $0xd8] sm:$0xff]
    %v218 = vld [vmem:[%s189 + $0xe0] sm:$0xff]
    %v219 = vld [vmem:[%s189 + $0xe8] sm:$0xff]
    %v220 = vld [vmem:[%s189 + $0xf0] sm:$0xff]
    %v221 = vld [vmem:[%s189 + $0xf8] sm:$0xff]
    %v254 = vunpack.c.l.b16 %v190
    %v255 = vunpack.c.h.b16 %v190
    %v256 = vunpack.c.l.b16 %v191
    %v257 = vunpack.c.h.b16 %v191
    %v258 = vunpack.c.l.b16 %v192
    %v259 = vunpack.c.h.b16 %v192
    %v260 = vunpack.c.l.b16 %v193
    %v261 = vunpack.c.h.b16 %v193
    %v262 = vunpack.c.l.b16 %v194
    %v263 = vunpack.c.h.b16 %v194
    %v264 = vunpack.c.l.b16 %v195
    %v265 = vunpack.c.h.b16 %v195
    %v266 = vunpack.c.l.b16 %v196
    %v267 = vunpack.c.h.b16 %v196
    %v268 = vunpack.c.l.b16 %v197
    %v269 = vunpack.c.h.b16 %v197
    %v270 = vunpack.c.l.b16 %v198
    %v271 = vunpack.c.h.b16 %v198
    %v272 = vunpack.c.l.b16 %v199
    %v273 = vunpack.c.h.b16 %v199
    %v274 = vunpack.c.l.b16 %v200
    %v275 = vunpack.c.h.b16 %v200
    %v276 = vunpack.c.l.b16 %v201
    %v277 = vunpack.c.h.b16 %v201
    %v278 = vunpack.c.l.b16 %v202
    %v279 = vunpack.c.h.b16 %v202
    %v280 = vunpack.c.l.b16 %v203
    %v281 = vunpack.c.h.b16 %v203
    %v282 = vunpack.c.l.b16 %v204
    %v283 = vunpack.c.h.b16 %v204
    %v284 = vunpack.c.l.b16 %v205
    %v285 = vunpack.c.h.b16 %v205
    %v286 = vunpack.c.l.b16 %v206
    %v287 = vunpack.c.h.b16 %v206
    %v288 = vunpack.c.l.b16 %v207
    %v289 = vunpack.c.h.b16 %v207
    %v290 = vunpack.c.l.b16 %v208
    %v291 = vunpack.c.h.b16 %v208
    %v292 = vunpack.c.l.b16 %v209
    %v293 = vunpack.c.h.b16 %v209
    %v294 = vunpack.c.l.b16 %v210
    %v295 = vunpack.c.h.b16 %v210
    %v296 = vunpack.c.l.b16 %v211
    %v297 = vunpack.c.h.b16 %v211
    %v298 = vunpack.c.l.b16 %v212
    %v299 = vunpack.c.h.b16 %v212
    %v300 = vunpack.c.l.b16 %v213
    %v301 = vunpack.c.h.b16 %v213
    %v302 = vunpack.c.l.b16 %v214
    %v303 = vunpack.c.h.b16 %v214
    %v304 = vunpack.c.l.b16 %v215
    %v305 = vunpack.c.h.b16 %v215
    %v306 = vunpack.c.l.b16 %v216
    %v307 = vunpack.c.h.b16 %v216
    %v308 = vunpack.c.l.b16 %v217
    %v309 = vunpack.c.h.b16 %v217
    %v310 = vunpack.c.l.b16 %v218
    %v311 = vunpack.c.h.b16 %v218
    %v312 = vunpack.c.l.b16 %v219
    %v313 = vunpack.c.h.b16 %v219
    %v314 = vunpack.c.l.b16 %v220
    %v315 = vunpack.c.h.b16 %v220
    %v316 = vunpack.c.l.b16 %v221
    %v317 = vunpack.c.h.b16 %v221
    %v318 = vpack.c.b16 %v258, %v254
    %v319 = vpack.c.b16 %v259, %v255
    %v320 = vpack.c.b16 %v260, %v256
    %v321 = vpack.c.b16 %v261, %v257
    %v322 = vpack.c.b16 %v266, %v262
    %v323 = vpack.c.b16 %v267, %v263
    %v324 = vpack.c.b16 %v268, %v264
    %v325 = vpack.c.b16 %v269, %v265
    %v326 = vpack.c.b16 %v274, %v270
    %v327 = vpack.c.b16 %v275, %v271
    %v328 = vpack.c.b16 %v276, %v272
    %v329 = vpack.c.b16 %v277, %v273
    %v330 = vpack.c.b16 %v282, %v278
    %v331 = vpack.c.b16 %v283, %v279
    %v332 = vpack.c.b16 %v284, %v280
    %v333 = vpack.c.b16 %v285, %v281
    %v334 = vpack.c.b16 %v290, %v286
    %v335 = vpack.c.b16 %v291, %v287
    %v336 = vpack.c.b16 %v292, %v288
    %v337 = vpack.c.b16 %v293, %v289
    %v338 = vpack.c.b16 %v298, %v294
    %v339 = vpack.c.b16 %v299, %v295
    %v340 = vpack.c.b16 %v300, %v296
    %v341 = vpack.c.b16 %v301, %v297
    %v342 = vpack.c.b16 %v306, %v302
    %v343 = vpack.c.b16 %v307, %v303
    %v344 = vpack.c.b16 %v308, %v304
    %v345 = vpack.c.b16 %v309, %v305
    %v346 = vpack.c.b16 %v314, %v310
    %v347 = vpack.c.b16 %v315, %v311
    %v348 = vpack.c.b16 %v316, %v312
    %v349 = vpack.c.b16 %v317, %v313
    %382 = vmatprep.subr.bf16.mxu0 %v347
    %383 = vmatpush1.bf16.msra.mxu0 %v346
    %384 = vmatprep.subr.bf16.mxu0 %v343
    %385 = vmatpush1.bf16.msra.mxu0 %v342
    %386 = vmatprep.subr.bf16.mxu0 %v339
    %387 = vmatpush1.bf16.msra.mxu0 %v338
    %388 = vmatprep.subr.bf16.mxu0 %v335
    %389 = vmatpush1.bf16.msra.mxu0 %v334
    %390 = vmatprep.subr.bf16.mxu0 %v331
    %391 = vmatpush1.bf16.msra.mxu0 %v330
    %392 = vmatprep.subr.bf16.mxu0 %v327
    %393 = vmatpush1.bf16.msra.mxu0 %v326
    %394 = vmatprep.subr.bf16.mxu0 %v323
    %395 = vmatpush1.bf16.msra.mxu0 %v322
    %396 = vmatprep.subr.bf16.mxu0 %v319
    %397 = vmatpush1.bf16.msra.mxu0 %v318
    %398 = vmatprep.subr.bf16.mxu0 0
    %399 = vmatpush2.bf16.msra.mxu0 0
    %400 = vmatprep.subr.bf16.mxu0 0
    %401 = vmatpush2.bf16.msra.mxu0 0
    %402 = vmatprep.subr.bf16.mxu0 0
    %403 = vmatpush2.bf16.msra.mxu0 0
    %404 = vmatprep.subr.bf16.mxu0 0
    %405 = vmatpush2.bf16.msra.mxu0 0
    %406 = vmatprep.subr.bf16.mxu0 0
    %407 = vmatpush2.bf16.msra.mxu0 0
    %408 = vmatprep.subr.bf16.mxu0 0
    %409 = vmatpush2.bf16.msra.mxu0 0
    %410 = vmatprep.subr.bf16.mxu0 0
    %411 = vmatpush2.bf16.msra.mxu0 0
    %412 = vmatprep.subr.bf16.mxu0 0
    %413 = vmatpush2.bf16.msra.mxu0 0
    %414 = vmatprep.mubr.bf16.mxu0 0
    %415 = vmatmul.mubr.bf16.gmra.mxu0 %v188
    %v416 = vpop.f32.mrf.mxu0
    %v417 = vadd.f32 0.0, %v416
    %v418 = vpop.f32.mrf.mxu0
    %v419 = vadd.f32 0.0, %v418
    %v420 = vpop.f32.mrf.mxu0
    %v421 = vadd.f32 0.0, %v420
    %v422 = vpop.f32.mrf.mxu0
    %v423 = vadd.f32 0.0, %v422
    %424 = vdwg.mxu0
    %425 = vmatprep.subr.bf16.mxu0 %v349
    %426 = vmatpush1.bf16.msra.mxu0 %v348
    %427 = vmatprep.subr.bf16.mxu0 %v345
    %428 = vmatpush1.bf16.msra.mxu0 %v344
    %429 = vmatprep.subr.bf16.mxu0 %v341
    %430 = vmatpush1.bf16.msra.mxu0 %v340
    %431 = vmatprep.subr.bf16.mxu0 %v337
    %432 = vmatpush1.bf16.msra.mxu0 %v336
    %433 = vmatprep.subr.bf16.mxu0 %v333
    %434 = vmatpush1.bf16.msra.mxu0 %v332
    %435 = vmatprep.subr.bf16.mxu0 %v329
    %436 = vmatpush1.bf16.msra.mxu0 %v328
    %437 = vmatprep.subr.bf16.mxu0 %v325
    %438 = vmatpush1.bf16.msra.mxu0 %v324
    %439 = vmatprep.subr.bf16.mxu0 %v321
    %440 = vmatpush1.bf16.msra.mxu0 %v320
    %441 = vmatprep.subr.bf16.mxu0 0
    %442 = vmatpush2.bf16.msra.mxu0 0
    %443 = vmatprep.subr.bf16.mxu0 0
    %444 = vmatpush2.bf16.msra.mxu0 0
    %445 = vmatprep.subr.bf16.mxu0 0
    %446 = vmatpush2.bf16.msra.mxu0 0
    %447 = vmatprep.subr.bf16.mxu0 0
    %448 = vmatpush2.bf16.msra.mxu0 0
    %449 = vmatprep.subr.bf16.mxu0 0
    %450 = vmatpush2.bf16.msra.mxu0 0
    %451 = vmatprep.subr.bf16.mxu0 0
    %452 = vmatpush2.bf16.msra.mxu0 0
    %453 = vmatprep.subr.bf16.mxu0 0
    %454 = vmatpush2.bf16.msra.mxu0 0
    %455 = vmatprep.subr.bf16.mxu0 0
    %456 = vmatpush2.bf16.msra.mxu0 0
    %457 = vmatprep.mubr.bf16.mxu0 0
    %458 = vmatmul.mubr.bf16.gmra.mxu0 %v188
    %v459 = vpop.f32.mrf.mxu0
    %v460 = vadd.f32 0.0, %v459
    %v461 = vpop.f32.mrf.mxu0
    %v462 = vadd.f32 0.0, %v461
    %v463 = vpop.f32.mrf.mxu0
    %v464 = vadd.f32 0.0, %v463
    %v465 = vpop.f32.mrf.mxu0
    %v466 = vadd.f32 0.0, %v465
    %467 = vdwg.mxu0
    %v500 = vunpack.c.l.b16 %v81
    %v501 = vunpack.c.h.b16 %v81
    %v502 = vunpack.c.l.b16 %v82
    %v503 = vunpack.c.h.b16 %v82
    %v504 = vunpack.c.l.b16 %v83
    %v505 = vunpack.c.h.b16 %v83
    %v506 = vunpack.c.l.b16 %v84
    %v507 = vunpack.c.h.b16 %v84
    %v508 = vunpack.c.l.b16 %v85
    %v509 = vunpack.c.h.b16 %v85
    %v510 = vunpack.c.l.b16 %v86
    %v511 = vunpack.c.h.b16 %v86
    %v512 = vunpack.c.l.b16 %v87
    %v513 = vunpack.c.h.b16 %v87
    %v514 = vunpack.c.l.b16 %v88
    %v515 = vunpack.c.h.b16 %v88
    %v516 = vunpack.c.l.b16 %v89
    %v517 = vunpack.c.h.b16 %v89
    %v518 = vunpack.c.l.b16 %v90
    %v519 = vunpack.c.h.b16 %v90
    %v520 = vunpack.c.l.b16 %v91
    %v521 = vunpack.c.h.b16 %v91
    %v522 = vunpack.c.l.b16 %v92
    %v523 = vunpack.c.h.b16 %v92
    %v524 = vunpack.c.l.b16 %v93
    %v525 = vunpack.c.h.b16 %v93
    %v526 = vunpack.c.l.b16 %v94
    %v527 = vunpack.c.h.b16 %v94
    %v528 = vunpack.c.l.b16 %v95
    %v529 = vunpack.c.h.b16 %v95
    %v530 = vunpack.c.l.b16 %v96
    %v531 = vunpack.c.h.b16 %v96
    %v532 = vunpack.c.l.b16 %v97
    %v533 = vunpack.c.h.b16 %v97
    %v534 = vunpack.c.l.b16 %v98
    %v535 = vunpack.c.h.b16 %v98
    %v536 = vunpack.c.l.b16 %v99
    %v537 = vunpack.c.h.b16 %v99
    %v538 = vunpack.c.l.b16 %v100
    %v539 = vunpack.c.h.b16 %v100
    %v540 = vunpack.c.l.b16 %v101
    %v541 = vunpack.c.h.b16 %v101
    %v542 = vunpack.c.l.b16 %v102
    %v543 = vunpack.c.h.b16 %v102
    %v544 = vunpack.c.l.b16 %v103
    %v545 = vunpack.c.h.b16 %v103
    %v546 = vunpack.c.l.b16 %v104
    %v547 = vunpack.c.h.b16 %v104
    %v548 = vunpack.c.l.b16 %v105
    %v549 = vunpack.c.h.b16 %v105
    %v550 = vunpack.c.l.b16 %v106
    %v551 = vunpack.c.h.b16 %v106
    %v552 = vunpack.c.l.b16 %v107
    %v553 = vunpack.c.h.b16 %v107
    %v554 = vunpack.c.l.b16 %v108
    %v555 = vunpack.c.h.b16 %v108
    %v556 = vunpack.c.l.b16 %v109
    %v557 = vunpack.c.h.b16 %v109
    %v558 = vunpack.c.l.b16 %v110
    %v559 = vunpack.c.h.b16 %v110
    %v560 = vunpack.c.l.b16 %v111
    %v561 = vunpack.c.h.b16 %v111
    %v562 = vunpack.c.l.b16 %v112
    %v563 = vunpack.c.h.b16 %v112
    %v564 = vpack.c.b16 %v504, %v500
    %v565 = vpack.c.b16 %v505, %v501
    %v566 = vpack.c.b16 %v506, %v502
    %v567 = vpack.c.b16 %v507, %v503
    %v568 = vpack.c.b16 %v512, %v508
    %v569 = vpack.c.b16 %v513, %v509
    %v570 = vpack.c.b16 %v514, %v510
    %v571 = vpack.c.b16 %v515, %v511
    %v572 = vpack.c.b16 %v520, %v516
    %v573 = vpack.c.b16 %v521, %v517
    %v574 = vpack.c.b16 %v522, %v518
    %v575 = vpack.c.b16 %v523, %v519
    %v576 = vpack.c.b16 %v528, %v524
    %v577 = vpack.c.b16 %v529, %v525
    %v578 = vpack.c.b16 %v530, %v526
    %v579 = vpack.c.b16 %v531, %v527
    %v580 = vpack.c.b16 %v536, %v532
    %v581 = vpack.c.b16 %v537, %v533
    %v582 = vpack.c.b16 %v538, %v534
    %v583 = vpack.c.b16 %v539, %v535
    %v584 = vpack.c.b16 %v544, %v540
    %v585 = vpack.c.b16 %v545, %v541
    %v586 = vpack.c.b16 %v546, %v542
    %v587 = vpack.c.b16 %v547, %v543
    %v588 = vpack.c.b16 %v552, %v548
    %v589 = vpack.c.b16 %v553, %v549
    %v590 = vpack.c.b16 %v554, %v550
    %v591 = vpack.c.b16 %v555, %v551
    %v592 = vpack.c.b16 %v560, %v556
    %v593 = vpack.c.b16 %v561, %v557
    %v594 = vpack.c.b16 %v562, %v558
    %v595 = vpack.c.b16 %v563, %v559
    %628 = vmatprep.subr.bf16.mxu0 %v593
    %629 = vmatpush1.bf16.msra.mxu0 %v592
    %630 = vmatprep.subr.bf16.mxu0 %v589
    %631 = vmatpush1.bf16.msra.mxu0 %v588
    %632 = vmatprep.subr.bf16.mxu0 %v585
    %633 = vmatpush1.bf16.msra.mxu0 %v584
    %634 = vmatprep.subr.bf16.mxu0 %v581
    %635 = vmatpush1.bf16.msra.mxu0 %v580
    %636 = vmatprep.subr.bf16.mxu0 %v577
    %637 = vmatpush1.bf16.msra.mxu0 %v576
    %638 = vmatprep.subr.bf16.mxu0 %v573
    %639 = vmatpush1.bf16.msra.mxu0 %v572
    %640 = vmatprep.subr.bf16.mxu0 %v569
    %641 = vmatpush1.bf16.msra.mxu0 %v568
    %642 = vmatprep.subr.bf16.mxu0 %v565
    %643 = vmatpush1.bf16.msra.mxu0 %v564
    %644 = vmatprep.subr.bf16.mxu0 0
    %645 = vmatpush2.bf16.msra.mxu0 0
    %646 = vmatprep.subr.bf16.mxu0 0
    %647 = vmatpush2.bf16.msra.mxu0 0
    %648 = vmatprep.subr.bf16.mxu0 0
    %649 = vmatpush2.bf16.msra.mxu0 0
    %650 = vmatprep.subr.bf16.mxu0 0
    %651 = vmatpush2.bf16.msra.mxu0 0
    %652 = vmatprep.subr.bf16.mxu0 0
    %653 = vmatpush2.bf16.msra.mxu0 0
    %654 = vmatprep.subr.bf16.mxu0 0
    %655 = vmatpush2.bf16.msra.mxu0 0
    %656 = vmatprep.subr.bf16.mxu0 0
    %657 = vmatpush2.bf16.msra.mxu0 0
    %658 = vmatprep.subr.bf16.mxu0 0
    %659 = vmatpush2.bf16.msra.mxu0 0
    %660 = vmatprep.mubr.bf16.mxu0 0
    %661 = vmatmul.mubr.bf16.gmra.mxu0 %v141
    %v662 = vpop.f32.mrf.mxu0
    %v663 = vadd.f32 %v417, %v662
    %v664 = vpop.f32.mrf.mxu0
    %v665 = vadd.f32 %v419, %v664
    %v666 = vpop.f32.mrf.mxu0
    %v667 = vadd.f32 %v421, %v666
    %v668 = vpop.f32.mrf.mxu0
    %v669 = vadd.f32 %v423, %v668
    %670 = vdwg.mxu0
    %671 = vmatprep.subr.bf16.mxu0 %v595
    %672 = vmatpush1.bf16.msra.mxu0 %v594
    %673 = vmatprep.subr.bf16.mxu0 %v591
    %674 = vmatpush1.bf16.msra.mxu0 %v590
    %675 = vmatprep.subr.bf16.mxu0 %v587
    %676 = vmatpush1.bf16.msra.mxu0 %v586
    %677 = vmatprep.subr.bf16.mxu0 %v583
    %678 = vmatpush1.bf16.msra.mxu0 %v582
    %679 = vmatprep.subr.bf16.mxu0 %v579
    %680 = vmatpush1.bf16.msra.mxu0 %v578
    %681 = vmatprep.subr.bf16.mxu0 %v575
    %682 = vmatpush1.bf16.msra.mxu0 %v574
    %683 = vmatprep.subr.bf16.mxu0 %v571
    %684 = vmatpush1.bf16.msra.mxu0 %v570
    %685 = vmatprep.subr.bf16.mxu0 %v567
    %686 = vmatpush1.bf16.msra.mxu0 %v566
    %687 = vmatprep.subr.bf16.mxu0 0
    %688 = vmatpush2.bf16.msra.mxu0 0
    %689 = vmatprep.subr.bf16.mxu0 0
    %690 = vmatpush2.bf16.msra.mxu0 0
    %691 = vmatprep.subr.bf16.mxu0 0
    %692 = vmatpush2.bf16.msra.mxu0 0
    %693 = vmatprep.subr.bf16.mxu0 0
    %694 = vmatpush2.bf16.msra.mxu0 0
    %695 = vmatprep.subr.bf16.mxu0 0
    %696 = vmatpush2.bf16.msra.mxu0 0
    %697 = vmatprep.subr.bf16.mxu0 0
    %698 = vmatpush2.bf16.msra.mxu0 0
    %699 = vmatprep.subr.bf16.mxu0 0
    %700 = vmatpush2.bf16.msra.mxu0 0
    %701 = vmatprep.subr.bf16.mxu0 0
    %702 = vmatpush2.bf16.msra.mxu0 0
    %703 = vmatprep.mubr.bf16.mxu0 0
    %704 = vmatmul.mubr.bf16.gmra.mxu0 %v141
    %v705 = vpop.f32.mrf.mxu0
    %v706 = vadd.f32 %v460, %v705
    %v707 = vpop.f32.mrf.mxu0
    %v708 = vadd.f32 %v462, %v707
    %v709 = vpop.f32.mrf.mxu0
    %v710 = vadd.f32 %v464, %v709
    %v711 = vpop.f32.mrf.mxu0
    %v712 = vadd.f32 %v466, %v711
    %713 = vdwg.mxu0
    %714 = vmatprep.subr.bf16.mxu0 0
    %715 = vmatpush1.bf16.msra.mxu0 0
    %716 = vmatprep.subr.bf16.mxu0 0
    %717 = vmatpush1.bf16.msra.mxu0 0
    %718 = vmatprep.subr.bf16.mxu0 0
    %719 = vmatpush1.bf16.msra.mxu0 0
    %720 = vmatprep.subr.bf16.mxu0 0
    %721 = vmatpush1.bf16.msra.mxu0 0
    %722 = vmatprep.subr.bf16.mxu0 0
    %723 = vmatpush1.bf16.msra.mxu0 0
    %724 = vmatprep.subr.bf16.mxu0 0
    %725 = vmatpush1.bf16.msra.mxu0 0
    %726 = vmatprep.subr.bf16.mxu0 0
    %727 = vmatpush1.bf16.msra.mxu0 0
    %728 = vmatprep.subr.bf16.mxu0 0
    %729 = vmatpush1.bf16.msra.mxu0 %v188
    %730 = vmatprep.subr.bf16.mxu0 0
    %731 = vmatpush2.bf16.msra.mxu0 0
    %732 = vmatprep.subr.bf16.mxu0 0
    %733 = vmatpush2.bf16.msra.mxu0 0
    %734 = vmatprep.subr.bf16.mxu0 0
    %735 = vmatpush2.bf16.msra.mxu0 0
    %736 = vmatprep.subr.bf16.mxu0 0
    %737 = vmatpush2.bf16.msra.mxu0 0
    %738 = vmatprep.subr.bf16.mxu0 0
    %739 = vmatpush2.bf16.msra.mxu0 0
    %740 = vmatprep.subr.bf16.mxu0 0
    %741 = vmatpush2.bf16.msra.mxu0 0
    %742 = vmatprep.subr.bf16.mxu0 0
    %743 = vmatpush2.bf16.msra.mxu0 0
    %744 = vmatprep.subr.bf16.mxu0 0
    %745 = vmatpush2.bf16.msra.mxu0 0
    %746 = vmatprep.mubr.bf16.mxu0 0
    %747 = vmatmul.mubr.bf16.gmra.mxu0 %v145
    %v748 = vpop.f32.mrf.mxu0
    %v749 = vadd.f32 0.0, %v748
    %v750 = vpop.f32.mrf.mxu0
    %v751 = vpop.f32.mrf.mxu0
    %v752 = vadd.f32 0.0, %v751
    %v753 = vpop.f32.mrf.mxu0
    %754 = vdwg.mxu0
    %v755 = vmul.f32 %v749, 2.0
    %v756 = vmul.f32 %v752, 2.0
    %v757 = vsub.f32 %v755, %v79
    %v758 = vsub.f32 %v756, %v80
    %v759 = vpack.c.bf16 %v758, %v757
    %s760 = scalar_lea.vmem [#allocation8], 512
    %v761 = vld [vmem:[%s760] sm:$0xff]
    %v762 = vld [vmem:[%s760 + $0x8] sm:$0xff]
    %v763 = vld [vmem:[%s760 + $0x10] sm:$0xff]
    %v764 = vld [vmem:[%s760 + $0x18] sm:$0xff]
    %v765 = vld [vmem:[%s760 + $0x20] sm:$0xff]
    %v766 = vld [vmem:[%s760 + $0x28] sm:$0xff]
    %v767 = vld [vmem:[%s760 + $0x30] sm:$0xff]
    %v768 = vld [vmem:[%s760 + $0x38] sm:$0xff]
    %v769 = vld [vmem:[%s760 + $0x40] sm:$0xff]
    %v770 = vld [vmem:[%s760 + $0x48] sm:$0xff]
    %v771 = vld [vmem:[%s760 + $0x50] sm:$0xff]
    %v772 = vld [vmem:[%s760 + $0x58] sm:$0xff]
    %v773 = vld [vmem:[%s760 + $0x60] sm:$0xff]
    %v774 = vld [vmem:[%s760 + $0x68] sm:$0xff]
    %v775 = vld [vmem:[%s760 + $0x70] sm:$0xff]
    %v776 = vld [vmem:[%s760 + $0x78] sm:$0xff]
    %v777 = vld [vmem:[%s760 + $0x80] sm:$0xff]
    %v778 = vld [vmem:[%s760 + $0x88] sm:$0xff]
    %v779 = vld [vmem:[%s760 + $0x90] sm:$0xff]
    %v780 = vld [vmem:[%s760 + $0x98] sm:$0xff]
    %v781 = vld [vmem:[%s760 + $0xa0] sm:$0xff]
    %v782 = vld [vmem:[%s760 + $0xa8] sm:$0xff]
    %v783 = vld [vmem:[%s760 + $0xb0] sm:$0xff]
    %v784 = vld [vmem:[%s760 + $0xb8] sm:$0xff]
    %v785 = vld [vmem:[%s760 + $0xc0] sm:$0xff]
    %v786 = vld [vmem:[%s760 + $0xc8] sm:$0xff]
    %v787 = vld [vmem:[%s760 + $0xd0] sm:$0xff]
    %v788 = vld [vmem:[%s760 + $0xd8] sm:$0xff]
    %v789 = vld [vmem:[%s760 + $0xe0] sm:$0xff]
    %v790 = vld [vmem:[%s760 + $0xe8] sm:$0xff]
    %v791 = vld [vmem:[%s760 + $0xf0] sm:$0xff]
    %v792 = vld [vmem:[%s760 + $0xf8] sm:$0xff]
    %v825 = vunpack.c.l.b16 %v761
    %v826 = vunpack.c.h.b16 %v761
    %v827 = vunpack.c.l.b16 %v762
    %v828 = vunpack.c.h.b16 %v762
    %v829 = vunpack.c.l.b16 %v763
    %v830 = vunpack.c.h.b16 %v763
    %v831 = vunpack.c.l.b16 %v764
    %v832 = vunpack.c.h.b16 %v764
    %v833 = vunpack.c.l.b16 %v765
    %v834 = vunpack.c.h.b16 %v765
    %v835 = vunpack.c.l.b16 %v766
    %v836 = vunpack.c.h.b16 %v766
    %v837 = vunpack.c.l.b16 %v767
    %v838 = vunpack.c.h.b16 %v767
    %v839 = vunpack.c.l.b16 %v768
    %v840 = vunpack.c.h.b16 %v768
    %v841 = vunpack.c.l.b16 %v769
    %v842 = vunpack.c.h.b16 %v769
    %v843 = vunpack.c.l.b16 %v770
    %v844 = vunpack.c.h.b16 %v770
    %v845 = vunpack.c.l.b16 %v771
    %v846 = vunpack.c.h.b16 %v771
    %v847 = vunpack.c.l.b16 %v772
    %v848 = vunpack.c.h.b16 %v772
    %v849 = vunpack.c.l.b16 %v773
    %v850 = vunpack.c.h.b16 %v773
    %v851 = vunpack.c.l.b16 %v774
    %v852 = vunpack.c.h.b16 %v774
    %v853 = vunpack.c.l.b16 %v775
    %v854 = vunpack.c.h.b16 %v775
    %v855 = vunpack.c.l.b16 %v776
    %v856 = vunpack.c.h.b16 %v776
    %v857 = vunpack.c.l.b16 %v777
    %v858 = vunpack.c.h.b16 %v777
    %v859 = vunpack.c.l.b16 %v778
    %v860 = vunpack.c.h.b16 %v778
    %v861 = vunpack.c.l.b16 %v779
    %v862 = vunpack.c.h.b16 %v779
    %v863 = vunpack.c.l.b16 %v780
    %v864 = vunpack.c.h.b16 %v780
    %v865 = vunpack.c.l.b16 %v781
    %v866 = vunpack.c.h.b16 %v781
    %v867 = vunpack.c.l.b16 %v782
    %v868 = vunpack.c.h.b16 %v782
    %v869 = vunpack.c.l.b16 %v783
    %v870 = vunpack.c.h.b16 %v783
    %v871 = vunpack.c.l.b16 %v784
    %v872 = vunpack.c.h.b16 %v784
    %v873 = vunpack.c.l.b16 %v785
    %v874 = vunpack.c.h.b16 %v785
    %v875 = vunpack.c.l.b16 %v786
    %v876 = vunpack.c.h.b16 %v786
    %v877 = vunpack.c.l.b16 %v787
    %v878 = vunpack.c.h.b16 %v787
    %v879 = vunpack.c.l.b16 %v788
    %v880 = vunpack.c.h.b16 %v788
    %v881 = vunpack.c.l.b16 %v789
    %v882 = vunpack.c.h.b16 %v789
    %v883 = vunpack.c.l.b16 %v790
    %v884 = vunpack.c.h.b16 %v790
    %v885 = vunpack.c.l.b16 %v791
    %v886 = vunpack.c.h.b16 %v791
    %v887 = vunpack.c.l.b16 %v792
    %v888 = vunpack.c.h.b16 %v792
    %v889 = vpack.c.b16 %v829, %v825
    %v890 = vpack.c.b16 %v830, %v826
    %v891 = vpack.c.b16 %v831, %v827
    %v892 = vpack.c.b16 %v832, %v828
    %v893 = vpack.c.b16 %v837, %v833
    %v894 = vpack.c.b16 %v838, %v834
    %v895 = vpack.c.b16 %v839, %v835
    %v896 = vpack.c.b16 %v840, %v836
    %v897 = vpack.c.b16 %v845, %v841
    %v898 = vpack.c.b16 %v846, %v842
    %v899 = vpack.c.b16 %v847, %v843
    %v900 = vpack.c.b16 %v848, %v844
    %v901 = vpack.c.b16 %v853, %v849
    %v902 = vpack.c.b16 %v854, %v850
    %v903 = vpack.c.b16 %v855, %v851
    %v904 = vpack.c.b16 %v856, %v852
    %v905 = vpack.c.b16 %v861, %v857
    %v906 = vpack.c.b16 %v862, %v858
    %v907 = vpack.c.b16 %v863, %v859
    %v908 = vpack.c.b16 %v864, %v860
    %v909 = vpack.c.b16 %v869, %v865
    %v910 = vpack.c.b16 %v870, %v866
    %v911 = vpack.c.b16 %v871, %v867
    %v912 = vpack.c.b16 %v872, %v868
    %v913 = vpack.c.b16 %v877, %v873
    %v914 = vpack.c.b16 %v878, %v874
    %v915 = vpack.c.b16 %v879, %v875
    %v916 = vpack.c.b16 %v880, %v876
    %v917 = vpack.c.b16 %v885, %v881
    %v918 = vpack.c.b16 %v886, %v882
    %v919 = vpack.c.b16 %v887, %v883
    %v920 = vpack.c.b16 %v888, %v884
    %953 = vmatprep.subr.bf16.mxu0 %v918
    %954 = vmatpush1.bf16.msra.mxu0 %v917
    %955 = vmatprep.subr.bf16.mxu0 %v914
    %956 = vmatpush1.bf16.msra.mxu0 %v913
    %957 = vmatprep.subr.bf16.mxu0 %v910
    %958 = vmatpush1.bf16.msra.mxu0 %v909
    %959 = vmatprep.subr.bf16.mxu0 %v906
    %960 = vmatpush1.bf16.msra.mxu0 %v905
    %961 = vmatprep.subr.bf16.mxu0 %v902
    %962 = vmatpush1.bf16.msra.mxu0 %v901
    %963 = vmatprep.subr.bf16.mxu0 %v898
    %964 = vmatpush1.bf16.msra.mxu0 %v897
    %965 = vmatprep.subr.bf16.mxu0 %v894
    %966 = vmatpush1.bf16.msra.mxu0 %v893
    %967 = vmatprep.subr.bf16.mxu0 %v890
    %968 = vmatpush1.bf16.msra.mxu0 %v889
    %969 = vmatprep.subr.bf16.mxu0 0
    %970 = vmatpush2.bf16.msra.mxu0 0
    %971 = vmatprep.subr.bf16.mxu0 0
    %972 = vmatpush2.bf16.msra.mxu0 0
    %973 = vmatprep.subr.bf16.mxu0 0
    %974 = vmatpush2.bf16.msra.mxu0 0
    %975 = vmatprep.subr.bf16.mxu0 0
    %976 = vmatpush2.bf16.msra.mxu0 0
    %977 = vmatprep.subr.bf16.mxu0 0
    %978 = vmatpush2.bf16.msra.mxu0 0
    %979 = vmatprep.subr.bf16.mxu0 0
    %980 = vmatpush2.bf16.msra.mxu0 0
    %981 = vmatprep.subr.bf16.mxu0 0
    %982 = vmatpush2.bf16.msra.mxu0 0
    %983 = vmatprep.subr.bf16.mxu0 0
    %984 = vmatpush2.bf16.msra.mxu0 0
    %985 = vmatprep.mubr.bf16.mxu0 0
    %986 = vmatmul.mubr.bf16.gmra.mxu0 %v759
    %v987 = vpop.f32.mrf.mxu0
    %v988 = vadd.f32 0.0, %v987
    %v989 = vpop.f32.mrf.mxu0
    %v990 = vadd.f32 0.0, %v989
    %v991 = vpop.f32.mrf.mxu0
    %v992 = vadd.f32 0.0, %v991
    %v993 = vpop.f32.mrf.mxu0
    %v994 = vadd.f32 0.0, %v993
    %995 = vdwg.mxu0
    %996 = vmatprep.subr.bf16.mxu0 %v920
    %997 = vmatpush1.bf16.msra.mxu0 %v919
    %998 = vmatprep.subr.bf16.mxu0 %v916
    %999 = vmatpush1.bf16.msra.mxu0 %v915
    %1000 = vmatprep.subr.bf16.mxu0 %v912
    %1001 = vmatpush1.bf16.msra.mxu0 %v911
    %1002 = vmatprep.subr.bf16.mxu0 %v908
    %1003 = vmatpush1.bf16.msra.mxu0 %v907
    %1004 = vmatprep.subr.bf16.mxu0 %v904
    %1005 = vmatpush1.bf16.msra.mxu0 %v903
    %1006 = vmatprep.subr.bf16.mxu0 %v900
    %1007 = vmatpush1.bf16.msra.mxu0 %v899
    %1008 = vmatprep.subr.bf16.mxu0 %v896
    %1009 = vmatpush1.bf16.msra.mxu0 %v895
    %1010 = vmatprep.subr.bf16.mxu0 %v892
    %1011 = vmatpush1.bf16.msra.mxu0 %v891
    %1012 = vmatprep.subr.bf16.mxu0 0
    %1013 = vmatpush2.bf16.msra.mxu0 0
    %1014 = vmatprep.subr.bf16.mxu0 0
    %1015 = vmatpush2.bf16.msra.mxu0 0
    %1016 = vmatprep.subr.bf16.mxu0 0
    %1017 = vmatpush2.bf16.msra.mxu0 0
    %1018 = vmatprep.subr.bf16.mxu0 0
    %1019 = vmatpush2.bf16.msra.mxu0 0
    %1020 = vmatprep.subr.bf16.mxu0 0
    %1021 = vmatpush2.bf16.msra.mxu0 0
    %1022 = vmatprep.subr.bf16.mxu0 0
    %1023 = vmatpush2.bf16.msra.mxu0 0
    %1024 = vmatprep.subr.bf16.mxu0 0
    %1025 = vmatpush2.bf16.msra.mxu0 0
    %1026 = vmatprep.subr.bf16.mxu0 0
    %1027 = vmatpush2.bf16.msra.mxu0 0
    %1028 = vmatprep.mubr.bf16.mxu0 0
    %1029 = vmatmul.mubr.bf16.gmra.mxu0 %v759
    %v1030 = vpop.f32.mrf.mxu0
    %v1031 = vadd.f32 0.0, %v1030
    %v1032 = vpop.f32.mrf.mxu0
    %v1033 = vadd.f32 0.0, %v1032
    %v1034 = vpop.f32.mrf.mxu0
    %v1035 = vadd.f32 0.0, %v1034
    %v1036 = vpop.f32.mrf.mxu0
    %v1037 = vadd.f32 0.0, %v1036
    %1038 = vdwg.mxu0
    %v1039 = vadd.f32 %v663, %v988
    %v1040 = vadd.f32 %v665, %v990
    %v1041 = vadd.f32 %v706, %v1031
    %v1042 = vadd.f32 %v708, %v1033
    %v1043 = vadd.f32 %v667, %v992
    %v1044 = vadd.f32 %v669, %v994
    %v1045 = vadd.f32 %v710, %v1035
    %v1046 = vadd.f32 %v712, %v1037
    %v1047 = vld [vmem:[#allocation7] sm:$0xf]
    %v1048 = vld [vmem:[#allocation7 + $0x4] sm:$0xf]
    %v1051 = vunpack.c.l.b16 %v1047
    %v1052 = vunpack.c.l.b16 %v1048
    %v1053 = vpack.c.b16 %v1052, %v1051
    %1055 = vxpose.xlu0.c.b16.start [1/8] %v1053, 128
    %1056 = vxpose.xlu0.c.b16.cont [2/8] 0, 128
    %1057 = vxpose.xlu0.c.b16.cont [3/8] 0, 128
    %1058 = vxpose.xlu0.c.b16.cont [4/8] 0, 128
    %1059 = vxpose.xlu0.c.b16.cont [5/8] 0, 128
    %1060 = vxpose.xlu0.c.b16.cont [6/8] 0, 128
    %1061 = vxpose.xlu0.c.b16.cont [7/8] 0, 128
    %1062 = vxpose.xlu0.c.b16.end [8/8] 0, 128
    %v1063 = vpop.trf.xlu0
    %v1064 = vpop.trf.xlu0
    %v1065 = vpop.trf.xlu0
    %v1066 = vpop.trf.xlu0
    %v1067 = vpop.trf.xlu0
    %v1068 = vpop.trf.xlu0
    %v1069 = vpop.trf.xlu0
    %v1070 = vpop.trf.xlu0
    %v1072 = vsel %vm143, %v1063, 0
    %1074 = vmatprep.subr.bf16.mxu0 0
    %1075 = vmatpush1.bf16.msra.mxu0 0
    %1076 = vmatprep.subr.bf16.mxu0 0
    %1077 = vmatpush1.bf16.msra.mxu0 0
    %1078 = vmatprep.subr.bf16.mxu0 0
    %1079 = vmatpush1.bf16.msra.mxu0 0
    %1080 = vmatprep.subr.bf16.mxu0 0
    %1081 = vmatpush1.bf16.msra.mxu0 0
    %1082 = vmatprep.subr.bf16.mxu0 0
    %1083 = vmatpush1.bf16.msra.mxu0 0
    %1084 = vmatprep.subr.bf16.mxu0 0
    %1085 = vmatpush1.bf16.msra.mxu0 0
    %1086 = vmatprep.subr.bf16.mxu0 0
    %1087 = vmatpush1.bf16.msra.mxu0 0
    %1088 = vmatprep.subr.bf16.mxu0 0
    %1089 = vmatpush1.bf16.msra.mxu0 %v188
    %1090 = vmatprep.subr.bf16.mxu0 0
    %1091 = vmatpush2.bf16.msra.mxu0 0
    %1092 = vmatprep.subr.bf16.mxu0 0
    %1093 = vmatpush2.bf16.msra.mxu0 0
    %1094 = vmatprep.subr.bf16.mxu0 0
    %1095 = vmatpush2.bf16.msra.mxu0 0
    %1096 = vmatprep.subr.bf16.mxu0 0
    %1097 = vmatpush2.bf16.msra.mxu0 0
    %1098 = vmatprep.subr.bf16.mxu0 0
    %1099 = vmatpush2.bf16.msra.mxu0 0
    %1100 = vmatprep.subr.bf16.mxu0 0
    %1101 = vmatpush2.bf16.msra.mxu0 0
    %1102 = vmatprep.subr.bf16.mxu0 0
    %1103 = vmatpush2.bf16.msra.mxu0 0
    %1104 = vmatprep.subr.bf16.mxu0 0
    %1105 = vmatpush2.bf16.msra.mxu0 0
    %1106 = vmatprep.mubr.bf16.mxu0 0
    %1107 = vmatmul.mubr.bf16.gmra.mxu0 %v1072
    %v1108 = vpop.f32.mrf.mxu0
    %v1109 = vadd.f32 0.0, %v1108
    %v1110 = vpop.f32.mrf.mxu0
    %v1111 = vpop.f32.mrf.mxu0
    %v1112 = vadd.f32 0.0, %v1111
    %v1113 = vpop.f32.mrf.mxu0
    %1114 = vdwg.mxu0
    %v1115 = vpack.c.bf16 %v1112, %v1109
    %s1116 = scalar_lea.vmem [#allocation8], 768
    %v1117 = vld [vmem:[%s1116] sm:$0xff]
    %v1118 = vld [vmem:[%s1116 + $0x8] sm:$0xff]
    %v1119 = vld [vmem:[%s1116 + $0x10] sm:$0xff]
    %v1120 = vld [vmem:[%s1116 + $0x18] sm:$0xff]
    %v1121 = vld [vmem:[%s1116 + $0x20] sm:$0xff]
    %v1122 = vld [vmem:[%s1116 + $0x28] sm:$0xff]
    %v1123 = vld [vmem:[%s1116 + $0x30] sm:$0xff]
    %v1124 = vld [vmem:[%s1116 + $0x38] sm:$0xff]
    %v1125 = vld [vmem:[%s1116 + $0x40] sm:$0xff]
    %v1126 = vld [vmem:[%s1116 + $0x48] sm:$0xff]
    %v1127 = vld [vmem:[%s1116 + $0x50] sm:$0xff]
    %v1128 = vld [vmem:[%s1116 + $0x58] sm:$0xff]
    %v1129 = vld [vmem:[%s1116 + $0x60] sm:$0xff]
    %v1130 = vld [vmem:[%s1116 + $0x68] sm:$0xff]
    %v1131 = vld [vmem:[%s1116 + $0x70] sm:$0xff]
    %v1132 = vld [vmem:[%s1116 + $0x78] sm:$0xff]
    %v1133 = vld [vmem:[%s1116 + $0x80] sm:$0xff]
    %v1134 = vld [vmem:[%s1116 + $0x88] sm:$0xff]
    %v1135 = vld [vmem:[%s1116 + $0x90] sm:$0xff]
    %v1136 = vld [vmem:[%s1116 + $0x98] sm:$0xff]
    %v1137 = vld [vmem:[%s1116 + $0xa0] sm:$0xff]
    %v1138 = vld [vmem:[%s1116 + $0xa8] sm:$0xff]
    %v1139 = vld [vmem:[%s1116 + $0xb0] sm:$0xff]
    %v1140 = vld [vmem:[%s1116 + $0xb8] sm:$0xff]
    %v1141 = vld [vmem:[%s1116 + $0xc0] sm:$0xff]
    %v1142 = vld [vmem:[%s1116 + $0xc8] sm:$0xff]
    %v1143 = vld [vmem:[%s1116 + $0xd0] sm:$0xff]
    %v1144 = vld [vmem:[%s1116 + $0xd8] sm:$0xff]
    %v1145 = vld [vmem:[%s1116 + $0xe0] sm:$0xff]
    %v1146 = vld [vmem:[%s1116 + $0xe8] sm:$0xff]
    %v1147 = vld [vmem:[%s1116 + $0xf0] sm:$0xff]
    %v1148 = vld [vmem:[%s1116 + $0xf8] sm:$0xff]
    %v1181 = vunpack.c.l.b16 %v1117
    %v1182 = vunpack.c.h.b16 %v1117
    %v1183 = vunpack.c.l.b16 %v1118
    %v1184 = vunpack.c.h.b16 %v1118
    %v1185 = vunpack.c.l.b16 %v1119
    %v1186 = vunpack.c.h.b16 %v1119
    %v1187 = vunpack.c.l.b16 %v1120
    %v1188 = vunpack.c.h.b16 %v1120
    %v1189 = vunpack.c.l.b16 %v1121
    %v1190 = vunpack.c.h.b16 %v1121
    %v1191 = vunpack.c.l.b16 %v1122
    %v1192 = vunpack.c.h.b16 %v1122
    %v1193 = vunpack.c.l.b16 %v1123
    %v1194 = vunpack.c.h.b16 %v1123
    %v1195 = vunpack.c.l.b16 %v1124
    %v1196 = vunpack.c.h.b16 %v1124
    %v1197 = vunpack.c.l.b16 %v1125
    %v1198 = vunpack.c.h.b16 %v1125
    %v1199 = vunpack.c.l.b16 %v1126
    %v1200 = vunpack.c.h.b16 %v1126
    %v1201 = vunpack.c.l.b16 %v1127
    %v1202 = vunpack.c.h.b16 %v1127
    %v1203 = vunpack.c.l.b16 %v1128
    %v1204 = vunpack.c.h.b16 %v1128
    %v1205 = vunpack.c.l.b16 %v1129
    %v1206 = vunpack.c.h.b16 %v1129
    %v1207 = vunpack.c.l.b16 %v1130
    %v1208 = vunpack.c.h.b16 %v1130
    %v1209 = vunpack.c.l.b16 %v1131
    %v1210 = vunpack.c.h.b16 %v1131
    %v1211 = vunpack.c.l.b16 %v1132
    %v1212 = vunpack.c.h.b16 %v1132
    %v1213 = vunpack.c.l.b16 %v1133
    %v1214 = vunpack.c.h.b16 %v1133
    %v1215 = vunpack.c.l.b16 %v1134
    %v1216 = vunpack.c.h.b16 %v1134
    %v1217 = vunpack.c.l.b16 %v1135
    %v1218 = vunpack.c.h.b16 %v1135
    %v1219 = vunpack.c.l.b16 %v1136
    %v1220 = vunpack.c.h.b16 %v1136
    %v1221 = vunpack.c.l.b16 %v1137
    %v1222 = vunpack.c.h.b16 %v1137
    %v1223 = vunpack.c.l.b16 %v1138
    %v1224 = vunpack.c.h.b16 %v1138
    %v1225 = vunpack.c.l.b16 %v1139
    %v1226 = vunpack.c.h.b16 %v1139
    %v1227 = vunpack.c.l.b16 %v1140
    %v1228 = vunpack.c.h.b16 %v1140
    %v1229 = vunpack.c.l.b16 %v1141
    %v1230 = vunpack.c.h.b16 %v1141
    %v1231 = vunpack.c.l.b16 %v1142
    %v1232 = vunpack.c.h.b16 %v1142
    %v1233 = vunpack.c.l.b16 %v1143
    %v1234 = vunpack.c.h.b16 %v1143
    %v1235 = vunpack.c.l.b16 %v1144
    %v1236 = vunpack.c.h.b16 %v1144
    %v1237 = vunpack.c.l.b16 %v1145
    %v1238 = vunpack.c.h.b16 %v1145
    %v1239 = vunpack.c.l.b16 %v1146
    %v1240 = vunpack.c.h.b16 %v1146
    %v1241 = vunpack.c.l.b16 %v1147
    %v1242 = vunpack.c.h.b16 %v1147
    %v1243 = vunpack.c.l.b16 %v1148
    %v1244 = vunpack.c.h.b16 %v1148
    %v1245 = vpack.c.b16 %v1185, %v1181
    %v1246 = vpack.c.b16 %v1186, %v1182
    %v1247 = vpack.c.b16 %v1187, %v1183
    %v1248 = vpack.c.b16 %v1188, %v1184
    %v1249 = vpack.c.b16 %v1193, %v1189
    %v1250 = vpack.c.b16 %v1194, %v1190
    %v1251 = vpack.c.b16 %v1195, %v1191
    %v1252 = vpack.c.b16 %v1196, %v1192
    %v1253 = vpack.c.b16 %v1201, %v1197
    %v1254 = vpack.c.b16 %v1202, %v1198
    %v1255 = vpack.c.b16 %v1203, %v1199
    %v1256 = vpack.c.b16 %v1204, %v1200
    %v1257 = vpack.c.b16 %v1209, %v1205
    %v1258 = vpack.c.b16 %v1210, %v1206
    %v1259 = vpack.c.b16 %v1211, %v1207
    %v1260 = vpack.c.b16 %v1212, %v1208
    %v1261 = vpack.c.b16 %v1217, %v1213
    %v1262 = vpack.c.b16 %v1218, %v1214
    %v1263 = vpack.c.b16 %v1219, %v1215
    %v1264 = vpack.c.b16 %v1220, %v1216
    %v1265 = vpack.c.b16 %v1225, %v1221
    %v1266 = vpack.c.b16 %v1226, %v1222
    %v1267 = vpack.c.b16 %v1227, %v1223
    %v1268 = vpack.c.b16 %v1228, %v1224
    %v1269 = vpack.c.b16 %v1233, %v1229
    %v1270 = vpack.c.b16 %v1234, %v1230
    %v1271 = vpack.c.b16 %v1235, %v1231
    %v1272 = vpack.c.b16 %v1236, %v1232
    %v1273 = vpack.c.b16 %v1241, %v1237
    %v1274 = vpack.c.b16 %v1242, %v1238
    %v1275 = vpack.c.b16 %v1243, %v1239
    %v1276 = vpack.c.b16 %v1244, %v1240
    %1309 = vmatprep.subr.bf16.mxu0 %v1274
    %1310 = vmatpush1.bf16.msra.mxu0 %v1273
    %1311 = vmatprep.subr.bf16.mxu0 %v1270
    %1312 = vmatpush1.bf16.msra.mxu0 %v1269
    %1313 = vmatprep.subr.bf16.mxu0 %v1266
    %1314 = vmatpush1.bf16.msra.mxu0 %v1265
    %1315 = vmatprep.subr.bf16.mxu0 %v1262
    %1316 = vmatpush1.bf16.msra.mxu0 %v1261
    %1317 = vmatprep.subr.bf16.mxu0 %v1258
    %1318 = vmatpush1.bf16.msra.mxu0 %v1257
    %1319 = vmatprep.subr.bf16.mxu0 %v1254
    %1320 = vmatpush1.bf16.msra.mxu0 %v1253
    %1321 = vmatprep.subr.bf16.mxu0 %v1250
    %1322 = vmatpush1.bf16.msra.mxu0 %v1249
    %1323 = vmatprep.subr.bf16.mxu0 %v1246
    %1324 = vmatpush1.bf16.msra.mxu0 %v1245
    %1325 = vmatprep.subr.bf16.mxu0 0
    %1326 = vmatpush2.bf16.msra.mxu0 0
    %1327 = vmatprep.subr.bf16.mxu0 0
    %1328 = vmatpush2.bf16.msra.mxu0 0
    %1329 = vmatprep.subr.bf16.mxu0 0
    %1330 = vmatpush2.bf16.msra.mxu0 0
    %1331 = vmatprep.subr.bf16.mxu0 0
    %1332 = vmatpush2.bf16.msra.mxu0 0
    %1333 = vmatprep.subr.bf16.mxu0 0
    %1334 = vmatpush2.bf16.msra.mxu0 0
    %1335 = vmatprep.subr.bf16.mxu0 0
    %1336 = vmatpush2.bf16.msra.mxu0 0
    %1337 = vmatprep.subr.bf16.mxu0 0
    %1338 = vmatpush2.bf16.msra.mxu0 0
    %1339 = vmatprep.subr.bf16.mxu0 0
    %1340 = vmatpush2.bf16.msra.mxu0 0
    %1341 = vmatprep.mubr.bf16.mxu0 0
    %1342 = vmatmul.mubr.bf16.gmra.mxu0 %v1115
    %v1343 = vpop.f32.mrf.mxu0
    %v1344 = vadd.f32 0.0, %v1343
    %v1345 = vpop.f32.mrf.mxu0
    %v1346 = vadd.f32 0.0, %v1345
    %v1347 = vpop.f32.mrf.mxu0
    %v1348 = vadd.f32 0.0, %v1347
    %v1349 = vpop.f32.mrf.mxu0
    %v1350 = vadd.f32 0.0, %v1349
    %1351 = vdwg.mxu0
    %1352 = vmatprep.subr.bf16.mxu0 %v1276
    %1353 = vmatpush1.bf16.msra.mxu0 %v1275
    %1354 = vmatprep.subr.bf16.mxu0 %v1272
    %1355 = vmatpush1.bf16.msra.mxu0 %v1271
    %1356 = vmatprep.subr.bf16.mxu0 %v1268
    %1357 = vmatpush1.bf16.msra.mxu0 %v1267
    %1358 = vmatprep.subr.bf16.mxu0 %v1264
    %1359 = vmatpush1.bf16.msra.mxu0 %v1263
    %1360 = vmatprep.subr.bf16.mxu0 %v1260
    %1361 = vmatpush1.bf16.msra.mxu0 %v1259
    %1362 = vmatprep.subr.bf16.mxu0 %v1256
    %1363 = vmatpush1.bf16.msra.mxu0 %v1255
    %1364 = vmatprep.subr.bf16.mxu0 %v1252
    %1365 = vmatpush1.bf16.msra.mxu0 %v1251
    %1366 = vmatprep.subr.bf16.mxu0 %v1248
    %1367 = vmatpush1.bf16.msra.mxu0 %v1247
    %1368 = vmatprep.subr.bf16.mxu0 0
    %1369 = vmatpush2.bf16.msra.mxu0 0
    %1370 = vmatprep.subr.bf16.mxu0 0
    %1371 = vmatpush2.bf16.msra.mxu0 0
    %1372 = vmatprep.subr.bf16.mxu0 0
    %1373 = vmatpush2.bf16.msra.mxu0 0
    %1374 = vmatprep.subr.bf16.mxu0 0
    %1375 = vmatpush2.bf16.msra.mxu0 0
    %1376 = vmatprep.subr.bf16.mxu0 0
    %1377 = vmatpush2.bf16.msra.mxu0 0
    %1378 = vmatprep.subr.bf16.mxu0 0
    %1379 = vmatpush2.bf16.msra.mxu0 0
    %1380 = vmatprep.subr.bf16.mxu0 0
    %1381 = vmatpush2.bf16.msra.mxu0 0
    %1382 = vmatprep.subr.bf16.mxu0 0
    %1383 = vmatpush2.bf16.msra.mxu0 0
    %1384 = vmatprep.mubr.bf16.mxu0 0
    %1385 = vmatmul.mubr.bf16.gmra.mxu0 %v1115
    %v1386 = vpop.f32.mrf.mxu0
    %v1387 = vadd.f32 0.0, %v1386
    %v1388 = vpop.f32.mrf.mxu0
    %v1389 = vadd.f32 0.0, %v1388
    %v1390 = vpop.f32.mrf.mxu0
    %v1391 = vadd.f32 0.0, %v1390
    %v1392 = vpop.f32.mrf.mxu0
    %v1393 = vadd.f32 0.0, %v1392
    %1394 = vdwg.mxu0
    %v1395 = vadd.f32 %v1039, %v1344
    %v1396 = vadd.f32 %v1040, %v1346
    %v1397 = vadd.f32 %v1041, %v1387
    %v1398 = vadd.f32 %v1042, %v1389
    %v1399 = vadd.f32 %v1043, %v1348
    %v1400 = vadd.f32 %v1044, %v1350
    %v1401 = vadd.f32 %v1045, %v1391
    %v1402 = vadd.f32 %v1046, %v1393
    %1403 = vmatprep.subr.bf16.mxu0 0
    %1404 = vmatpush1.bf16.msra.mxu0 0
    %1405 = vmatprep.subr.bf16.mxu0 0
    %1406 = vmatpush1.bf16.msra.mxu0 0
    %1407 = vmatprep.subr.bf16.mxu0 0
    %1408 = vmatpush1.bf16.msra.mxu0 0
    %1409 = vmatprep.subr.bf16.mxu0 0
    %1410 = vmatpush1.bf16.msra.mxu0 0
    %1411 = vmatprep.subr.bf16.mxu0 0
    %1412 = vmatpush1.bf16.msra.mxu0 0
    %1413 = vmatprep.subr.bf16.mxu0 0
    %1414 = vmatpush1.bf16.msra.mxu0 0
    %1415 = vmatprep.subr.bf16.mxu0 0
    %1416 = vmatpush1.bf16.msra.mxu0 0
    %1417 = vmatprep.subr.bf16.mxu0 0
    %1418 = vmatpush1.bf16.msra.mxu0 %v1115
    %1419 = vmatprep.subr.bf16.mxu0 0
    %1420 = vmatpush2.bf16.msra.mxu0 0
    %1421 = vmatprep.subr.bf16.mxu0 0
    %1422 = vmatpush2.bf16.msra.mxu0 0
    %1423 = vmatprep.subr.bf16.mxu0 0
    %1424 = vmatpush2.bf16.msra.mxu0 0
    %1425 = vmatprep.subr.bf16.mxu0 0
    %1426 = vmatpush2.bf16.msra.mxu0 0
    %1427 = vmatprep.subr.bf16.mxu0 0
    %1428 = vmatpush2.bf16.msra.mxu0 0
    %1429 = vmatprep.subr.bf16.mxu0 0
    %1430 = vmatpush2.bf16.msra.mxu0 0
    %1431 = vmatprep.subr.bf16.mxu0 0
    %1432 = vmatpush2.bf16.msra.mxu0 0
    %1433 = vmatprep.subr.bf16.mxu0 0
    %1434 = vmatpush2.bf16.msra.mxu0 0
    %1435 = vmatprep.mubr.bf16.mxu0 0
    %1436 = vmatmul.mubr.bf16.gmra.mxu0 %v1072
    %v1437 = vpop.f32.mrf.mxu0
    %v1438 = vadd.f32 0.0, %v1437
    %v1439 = vpop.f32.mrf.mxu0
    %v1440 = vpop.f32.mrf.mxu0
    %v1441 = vadd.f32 0.0, %v1440
    %v1442 = vpop.f32.mrf.mxu0
    %1443 = vdwg.mxu0
    %v1444 = vmul.f32 %v1438, 2.0
    %v1445 = vmul.f32 %v1441, 2.0
    %v1446 = vsub.f32 %v1444, %v182
    %v1447 = vsub.f32 %v1445, %v185
    %v1448 = vpack.c.bf16 %v1447, %v1446
    %s1449 = scalar_lea.vmem [#allocation8], 1024
    %v1450 = vld [vmem:[%s1449] sm:$0xff]
    %v1451 = vld [vmem:[%s1449 + $0x8] sm:$0xff]
    %v1452 = vld [vmem:[%s1449 + $0x10] sm:$0xff]
    %v1453 = vld [vmem:[%s1449 + $0x18] sm:$0xff]
    %v1454 = vld [vmem:[%s1449 + $0x20] sm:$0xff]
    %v1455 = vld [vmem:[%s1449 + $0x28] sm:$0xff]
    %v1456 = vld [vmem:[%s1449 + $0x30] sm:$0xff]
    %v1457 = vld [vmem:[%s1449 + $0x38] sm:$0xff]
    %v1458 = vld [vmem:[%s1449 + $0x40] sm:$0xff]
    %v1459 = vld [vmem:[%s1449 + $0x48] sm:$0xff]
    %v1460 = vld [vmem:[%s1449 + $0x50] sm:$0xff]
    %v1461 = vld [vmem:[%s1449 + $0x58] sm:$0xff]
    %v1462 = vld [vmem:[%s1449 + $0x60] sm:$0xff]
    %v1463 = vld [vmem:[%s1449 + $0x68] sm:$0xff]
    %v1464 = vld [vmem:[%s1449 + $0x70] sm:$0xff]
    %v1465 = vld [vmem:[%s1449 + $0x78] sm:$0xff]
    %v1466 = vld [vmem:[%s1449 + $0x80] sm:$0xff]
    %v1467 = vld [vmem:[%s1449 + $0x88] sm:$0xff]
    %v1468 = vld [vmem:[%s1449 + $0x90] sm:$0xff]
    %v1469 = vld [vmem:[%s1449 + $0x98] sm:$0xff]
    %v1470 = vld [vmem:[%s1449 + $0xa0] sm:$0xff]
    %v1471 = vld [vmem:[%s1449 + $0xa8] sm:$0xff]
    %v1472 = vld [vmem:[%s1449 + $0xb0] sm:$0xff]
    %v1473 = vld [vmem:[%s1449 + $0xb8] sm:$0xff]
    %v1474 = vld [vmem:[%s1449 + $0xc0] sm:$0xff]
    %v1475 = vld [vmem:[%s1449 + $0xc8] sm:$0xff]
    %v1476 = vld [vmem:[%s1449 + $0xd0] sm:$0xff]
    %v1477 = vld [vmem:[%s1449 + $0xd8] sm:$0xff]
    %v1478 = vld [vmem:[%s1449 + $0xe0] sm:$0xff]
    %v1479 = vld [vmem:[%s1449 + $0xe8] sm:$0xff]
    %v1480 = vld [vmem:[%s1449 + $0xf0] sm:$0xff]
    %v1481 = vld [vmem:[%s1449 + $0xf8] sm:$0xff]
    %v1514 = vunpack.c.l.b16 %v1450
    %v1515 = vunpack.c.h.b16 %v1450
    %v1516 = vunpack.c.l.b16 %v1451
    %v1517 = vunpack.c.h.b16 %v1451
    %v1518 = vunpack.c.l.b16 %v1452
    %v1519 = vunpack.c.h.b16 %v1452
    %v1520 = vunpack.c.l.b16 %v1453
    %v1521 = vunpack.c.h.b16 %v1453
    %v1522 = vunpack.c.l.b16 %v1454
    %v1523 = vunpack.c.h.b16 %v1454
    %v1524 = vunpack.c.l.b16 %v1455
    %v1525 = vunpack.c.h.b16 %v1455
    %v1526 = vunpack.c.l.b16 %v1456
    %v1527 = vunpack.c.h.b16 %v1456
    %v1528 = vunpack.c.l.b16 %v1457
    %v1529 = vunpack.c.h.b16 %v1457
    %v1530 = vunpack.c.l.b16 %v1458
    %v1531 = vunpack.c.h.b16 %v1458
    %v1532 = vunpack.c.l.b16 %v1459
    %v1533 = vunpack.c.h.b16 %v1459
    %v1534 = vunpack.c.l.b16 %v1460
    %v1535 = vunpack.c.h.b16 %v1460
    %v1536 = vunpack.c.l.b16 %v1461
    %v1537 = vunpack.c.h.b16 %v1461
    %v1538 = vunpack.c.l.b16 %v1462
    %v1539 = vunpack.c.h.b16 %v1462
    %v1540 = vunpack.c.l.b16 %v1463
    %v1541 = vunpack.c.h.b16 %v1463
    %v1542 = vunpack.c.l.b16 %v1464
    %v1543 = vunpack.c.h.b16 %v1464
    %v1544 = vunpack.c.l.b16 %v1465
    %v1545 = vunpack.c.h.b16 %v1465
    %v1546 = vunpack.c.l.b16 %v1466
    %v1547 = vunpack.c.h.b16 %v1466
    %v1548 = vunpack.c.l.b16 %v1467
    %v1549 = vunpack.c.h.b16 %v1467
    %v1550 = vunpack.c.l.b16 %v1468
    %v1551 = vunpack.c.h.b16 %v1468
    %v1552 = vunpack.c.l.b16 %v1469
    %v1553 = vunpack.c.h.b16 %v1469
    %v1554 = vunpack.c.l.b16 %v1470
    %v1555 = vunpack.c.h.b16 %v1470
    %v1556 = vunpack.c.l.b16 %v1471
    %v1557 = vunpack.c.h.b16 %v1471
    %v1558 = vunpack.c.l.b16 %v1472
    %v1559 = vunpack.c.h.b16 %v1472
    %v1560 = vunpack.c.l.b16 %v1473
    %v1561 = vunpack.c.h.b16 %v1473
    %v1562 = vunpack.c.l.b16 %v1474
    %v1563 = vunpack.c.h.b16 %v1474
    %v1564 = vunpack.c.l.b16 %v1475
    %v1565 = vunpack.c.h.b16 %v1475
    %v1566 = vunpack.c.l.b16 %v1476
    %v1567 = vunpack.c.h.b16 %v1476
    %v1568 = vunpack.c.l.b16 %v1477
    %v1569 = vunpack.c.h.b16 %v1477
    %v1570 = vunpack.c.l.b16 %v1478
    %v1571 = vunpack.c.h.b16 %v1478
    %v1572 = vunpack.c.l.b16 %v1479
    %v1573 = vunpack.c.h.b16 %v1479
    %v1574 = vunpack.c.l.b16 %v1480
    %v1575 = vunpack.c.h.b16 %v1480
    %v1576 = vunpack.c.l.b16 %v1481
    %v1577 = vunpack.c.h.b16 %v1481
    %v1578 = vpack.c.b16 %v1518, %v1514
    %v1579 = vpack.c.b16 %v1519, %v1515
    %v1580 = vpack.c.b16 %v1520, %v1516
    %v1581 = vpack.c.b16 %v1521, %v1517
    %v1582 = vpack.c.b16 %v1526, %v1522
    %v1583 = vpack.c.b16 %v1527, %v1523
    %v1584 = vpack.c.b16 %v1528, %v1524
    %v1585 = vpack.c.b16 %v1529, %v1525
    %v1586 = vpack.c.b16 %v1534, %v1530
    %v1587 = vpack.c.b16 %v1535, %v1531
    %v1588 = vpack.c.b16 %v1536, %v1532
    %v1589 = vpack.c.b16 %v1537, %v1533
    %v1590 = vpack.c.b16 %v1542, %v1538
    %v1591 = vpack.c.b16 %v1543, %v1539
    %v1592 = vpack.c.b16 %v1544, %v1540
    %v1593 = vpack.c.b16 %v1545, %v1541
    %v1594 = vpack.c.b16 %v1550, %v1546
    %v1595 = vpack.c.b16 %v1551, %v1547
    %v1596 = vpack.c.b16 %v1552, %v1548
    %v1597 = vpack.c.b16 %v1553, %v1549
    %v1598 = vpack.c.b16 %v1558, %v1554
    %v1599 = vpack.c.b16 %v1559, %v1555
    %v1600 = vpack.c.b16 %v1560, %v1556
    %v1601 = vpack.c.b16 %v1561, %v1557
    %v1602 = vpack.c.b16 %v1566, %v1562
    %v1603 = vpack.c.b16 %v1567, %v1563
    %v1604 = vpack.c.b16 %v1568, %v1564
    %v1605 = vpack.c.b16 %v1569, %v1565
    %v1606 = vpack.c.b16 %v1574, %v1570
    %v1607 = vpack.c.b16 %v1575, %v1571
    %v1608 = vpack.c.b16 %v1576, %v1572
    %v1609 = vpack.c.b16 %v1577, %v1573
    %1642 = vmatprep.subr.bf16.mxu0 %v1607
    %1643 = vmatpush1.bf16.msra.mxu0 %v1606
    %1644 = vmatprep.subr.bf16.mxu0 %v1603
    %1645 = vmatpush1.bf16.msra.mxu0 %v1602
    %1646 = vmatprep.subr.bf16.mxu0 %v1599
    %1647 = vmatpush1.bf16.msra.mxu0 %v1598
    %1648 = vmatprep.subr.bf16.mxu0 %v1595
    %1649 = vmatpush1.bf16.msra.mxu0 %v1594
    %1650 = vmatprep.subr.bf16.mxu0 %v1591
    %1651 = vmatpush1.bf16.msra.mxu0 %v1590
    %1652 = vmatprep.subr.bf16.mxu0 %v1587
    %1653 = vmatpush1.bf16.msra.mxu0 %v1586
    %1654 = vmatprep.subr.bf16.mxu0 %v1583
    %1655 = vmatpush1.bf16.msra.mxu0 %v1582
    %1656 = vmatprep.subr.bf16.mxu0 %v1579
    %1657 = vmatpush1.bf16.msra.mxu0 %v1578
    %1658 = vmatprep.subr.bf16.mxu0 0
    %1659 = vmatpush2.bf16.msra.mxu0 0
    %1660 = vmatprep.subr.bf16.mxu0 0
    %1661 = vmatpush2.bf16.msra.mxu0 0
    %1662 = vmatprep.subr.bf16.mxu0 0
    %1663 = vmatpush2.bf16.msra.mxu0 0
    %1664 = vmatprep.subr.bf16.mxu0 0
    %1665 = vmatpush2.bf16.msra.mxu0 0
    %1666 = vmatprep.subr.bf16.mxu0 0
    %1667 = vmatpush2.bf16.msra.mxu0 0
    %1668 = vmatprep.subr.bf16.mxu0 0
    %1669 = vmatpush2.bf16.msra.mxu0 0
    %1670 = vmatprep.subr.bf16.mxu0 0
    %1671 = vmatpush2.bf16.msra.mxu0 0
    %1672 = vmatprep.subr.bf16.mxu0 0
    %1673 = vmatpush2.bf16.msra.mxu0 0
    %1674 = vmatprep.mubr.bf16.mxu0 0
    %1675 = vmatmul.mubr.bf16.gmra.mxu0 %v1448
    %v1676 = vpop.f32.mrf.mxu0
    %v1677 = vadd.f32 0.0, %v1676
    %v1678 = vpop.f32.mrf.mxu0
    %v1679 = vadd.f32 0.0, %v1678
    %v1680 = vpop.f32.mrf.mxu0
    %v1681 = vadd.f32 0.0, %v1680
    %v1682 = vpop.f32.mrf.mxu0
    %v1683 = vadd.f32 0.0, %v1682
    %1684 = vdwg.mxu0
    %1685 = vmatprep.subr.bf16.mxu0 %v1609
    %1686 = vmatpush1.bf16.msra.mxu0 %v1608
    %1687 = vmatprep.subr.bf16.mxu0 %v1605
    %1688 = vmatpush1.bf16.msra.mxu0 %v1604
    %1689 = vmatprep.subr.bf16.mxu0 %v1601
    %1690 = vmatpush1.bf16.msra.mxu0 %v1600
    %1691 = vmatprep.subr.bf16.mxu0 %v1597
    %1692 = vmatpush1.bf16.msra.mxu0 %v1596
    %1693 = vmatprep.subr.bf16.mxu0 %v1593
    %1694 = vmatpush1.bf16.msra.mxu0 %v1592
    %1695 = vmatprep.subr.bf16.mxu0 %v1589
    %1696 = vmatpush1.bf16.msra.mxu0 %v1588
    %1697 = vmatprep.subr.bf16.mxu0 %v1585
    %1698 = vmatpush1.bf16.msra.mxu0 %v1584
    %1699 = vmatprep.subr.bf16.mxu0 %v1581
    %1700 = vmatpush1.bf16.msra.mxu0 %v1580
    %1701 = vmatprep.subr.bf16.mxu0 0
    %1702 = vmatpush2.bf16.msra.mxu0 0
    %1703 = vmatprep.subr.bf16.mxu0 0
    %1704 = vmatpush2.bf16.msra.mxu0 0
    %1705 = vmatprep.subr.bf16.mxu0 0
    %1706 = vmatpush2.bf16.msra.mxu0 0
    %1707 = vmatprep.subr.bf16.mxu0 0
    %1708 = vmatpush2.bf16.msra.mxu0 0
    %1709 = vmatprep.subr.bf16.mxu0 0
    %1710 = vmatpush2.bf16.msra.mxu0 0
    %1711 = vmatprep.subr.bf16.mxu0 0
    %1712 = vmatpush2.bf16.msra.mxu0 0
    %1713 = vmatprep.subr.bf16.mxu0 0
    %1714 = vmatpush2.bf16.msra.mxu0 0
    %1715 = vmatprep.subr.bf16.mxu0 0
    %1716 = vmatpush2.bf16.msra.mxu0 0
    %1717 = vmatprep.mubr.bf16.mxu0 0
    %1718 = vmatmul.mubr.bf16.gmra.mxu0 %v1448
    %v1719 = vpop.f32.mrf.mxu0
    %v1720 = vadd.f32 0.0, %v1719
    %v1721 = vpop.f32.mrf.mxu0
    %v1722 = vadd.f32 0.0, %v1721
    %v1723 = vpop.f32.mrf.mxu0
    %v1724 = vadd.f32 0.0, %v1723
    %v1725 = vpop.f32.mrf.mxu0
    %v1726 = vadd.f32 0.0, %v1725
    %1727 = vdwg.mxu0
    %v1728 = vadd.f32 %v1395, %v1677
    %v1729 = vadd.f32 %v1396, %v1679
    %v1730 = vadd.f32 %v1397, %v1720
    %v1731 = vadd.f32 %v1398, %v1722
    %v1732 = vadd.f32 %v1399, %v1681
    %v1733 = vadd.f32 %v1400, %v1683
    %v1734 = vadd.f32 %v1401, %v1724
    %v1735 = vadd.f32 %v1402, %v1726
    %v1736 = vld [vmem:[%s4] sm:$0xf]
    %v1738 = vlaneseq
    %v1739 = vshrl.u32 %v1738, 7
    %v1740 = vsub.s32 0, %v1739
    %v1741 = vrot.slane %v1736, %v1740
    %v1742 = vlaneseq
    %v1743 = vshrl.u32 %v1742, 7
    %v1744 = vsub.s32 1, %v1743
    %v1745 = vrot.slane %v1736, %v1744
    %v1746 = vlaneseq
    %v1747 = vshrl.u32 %v1746, 7
    %v1748 = vsub.s32 2, %v1747
    %v1749 = vrot.slane %v1736, %v1748
    %v1750 = vlaneseq
    %v1751 = vshrl.u32 %v1750, 7
    %v1752 = vsub.s32 3, %v1751
    %v1753 = vrot.slane %v1736, %v1752
    %v1758 = vadd.f32 %v1728, %v1741
    %v1759 = vadd.f32 %v1729, %v1745
    %v1760 = vadd.f32 %v1730, %v1749
    %v1761 = vadd.f32 %v1731, %v1753
    %v1762 = vadd.f32 %v1732, %v1741
    %v1763 = vadd.f32 %v1733, %v1745
    %v1764 = vadd.f32 %v1734, %v1749
    %v1765 = vadd.f32 %v1735, %v1753
    %v1766 = vmax.f32 %v1758, 0.0
    %v1767 = vmax.f32 %v1759, 0.0
    %v1768 = vmax.f32 %v1760, 0.0
    %v1769 = vmax.f32 %v1761, 0.0
    %v1770 = vmax.f32 %v1762, 0.0
    %v1771 = vmax.f32 %v1763, 0.0
    %v1772 = vmax.f32 %v1764, 0.0
    %v1773 = vmax.f32 %v1765, 0.0
    %1774 = vst [vmem:[#allocation10] sm:$0xff] %v1766
    %1775 = vst [vmem:[#allocation10 + $0x8] sm:$0xff] %v1767
    %1776 = vst [vmem:[#allocation10 + $0x10] sm:$0xff] %v1768
    %1777 = vst [vmem:[#allocation10 + $0x18] sm:$0xff] %v1769
    %1778 = vst [vmem:[#allocation10 + $0x20] sm:$0xff] %v1770
    %1779 = vst [vmem:[#allocation10 + $0x28] sm:$0xff] %v1771
    %1780 = vst [vmem:[#allocation10 + $0x30] sm:$0xff] %v1772
    %1781 = vst [vmem:[#allocation10 + $0x38] sm:$0xff] %v1773
    // Predicated region
    $region38: #{tpu_custom_call.1} parent=1 // pred_check
      _
    $region39: #{tpu_custom_call.1} parent=1 // pred_check_branch
      %1783 = sbr.rel (0) target = $region41
    $region40: #{tpu_custom_call.1} parent=1 // pred_region
      %s1785 = ssub.s32 1024, 1024
      %1786 = vsyncadd [#allocation4], %s1785
      %s1787 = sshll.u32 [#allocation10], 4
      %s1788 = int_to_ptr.vmem [resolvable:$true] %s1787
      %1793 = dma.vmem_to_hbm [thread:$0]  %s1788, 1024, %s5, [#allocation4], 512, 512, 32
    $region41: #{tpu_custom_call.1} parent=1 // pred_fallthru
      _
    // Predicated region
    $region42: #{tpu_custom_call.1} parent=1 // pred_check
      _
    $region43: #{tpu_custom_call.1} parent=1 // pred_check_branch
      %1795 = sbr.rel (0) target = $region45
    $region44: #{tpu_custom_call.1} parent=1 // pred_region
      %1796 = dma.done [#allocation4], 1024
    $region45: #{tpu_custom_call.1} parent=1 // pred_fallthru
      _
    %1797 = vsyncpa [#allocation3], 1
    %1798 = vsyncpa [#allocation6], 1
    %1799 = vsyncpa [#allocation9], 1
    %1800 = vsyncpa [#allocation4], 1

</llo_original>
